<compile_context>
chip_gen: v5e
topology: v5e:2x2
jax: 0.10.0
libtpu: 0.0.40
codegen_flags: <defaults>
</compile_context>

<pallas_src>
import functools

import jax
import jax.numpy as jnp
from jax import lax
from jax.experimental import pallas as pl
from jax.experimental.pallas import tpu as pltpu


# ---------------------------------------------------------------------------
# compile-time window helpers (PyTorch adaptive-pool semantics)
# ---------------------------------------------------------------------------
def _window_bounds(in_size: int, out_size: int):
    """[(start, end)] per output index, PyTorch adaptive-pool semantics."""
    bounds = []
    for i in range(out_size):
        s = (i * in_size) // out_size
        e = -((-(i + 1) * in_size) // out_size)  # ceil((i+1)*in/out)
        bounds.append((s, e))
    return bounds


def _mask01(in_size: int, out_size: int) -> jnp.ndarray:
    """(out_size, in_size) 0/1 mask; row i marks the adaptive-pool window."""
    rows = []
    for (s, e) in _window_bounds(in_size, out_size):
        rows.append([1.0 if s <= j < e else 0.0 for j in range(in_size)])
    return jnp.asarray(rows, dtype=jnp.float32)


def _round_up(v: int, m: int) -> int:
    return ((v + m - 1) // m) * m


# ---------------------------------------------------------------------------
# kernels
# ---------------------------------------------------------------------------
def _avg_kernel(mT_ref, inv_ref, x_ref, o_ref, *, precision):
    # mT_ref:  (H*W, OH*OW)   0/1 mask (x.dtype), grid-resident
    # inv_ref: (1, OH*OW)     f32 reciprocal window counts
    # x_ref:   (C_blk, H*W)   channels-first input block (H*W on lanes)
    # o_ref:   (C_blk, OH*OW) output block
    acc = jnp.dot(
        x_ref[...],
        mT_ref[...],
        preferred_element_type=jnp.float32,
        precision=precision,
    )
    o_ref[...] = (acc * inv_ref[...]).astype(o_ref.dtype)


def _max_kernel(m_ref, x_ref, o_ref, *, n_windows, neg):
    # m_ref: (OH*OW, H*W) f32 0/1 window masks (grid-resident)
    # x_ref: (C_blk, H*W); o_ref: (C_blk, OH*OW)
    x = x_ref[...]
    for i in range(n_windows):  # static unroll over output positions
        inside = m_ref[i:i + 1, :] != 0                      # (1, H*W)
        masked = jnp.where(inside, x, neg)                   # (C_blk, H*W)
        o_ref[:, i:i + 1] = jnp.max(
            masked, axis=-1, keepdims=True
        ).astype(o_ref.dtype)


# ---------------------------------------------------------------------------
# block sizing (generation-aware)
# ---------------------------------------------------------------------------
def _choose_channel_block(nc: int, hw: int, ohow: int, itemsize: int):
    """Pick a lane-friendly channel block + vmem limit from VMEM capacity."""
    try:
        cap = int(pltpu.get_tpu_info().vmem_capacity_bytes)
    except Exception:
        cap = 64 << 20  # conservative default (v7x per-TC VMEM)
    vmem_limit = int(min(cap * 3 // 4, 100 << 20))  # ~48 MiB v7x, ~96 MiB v5e/v6e

    # bytes independent of the channel block: mask + inv (double-buffer slots)
    const_bytes = 2 * (hw * ohow * itemsize + ohow * 4)
    # budget for the double-buffered per-channel working set (input + output)
    budget = max(2 << 20, int(vmem_limit * 0.6) - const_bytes)
    per_chan = 2 * (hw + ohow) * itemsize  # 2x double buffering
    blk = max(128, (budget // max(per_chan, 1)) // 128 * 128)

    nc128 = _round_up(nc, 128)
    blk = min(blk, nc128)
    # v7x megacore: keep >=2 grid blocks so both TensorCores get work
    if blk >= nc128 and nc128 >= 256:
        blk = _round_up(nc128 // 2, 128)
    return int(blk), vmem_limit


# ---------------------------------------------------------------------------
# wrapper
# ---------------------------------------------------------------------------
def adaptive_pool2d(x, output_size, pool_type):
    """x: (N, C, H, W). Returns (N, C, OH, OW), same dtype as x."""
    if pool_type not in ("avg", "max"):
        raise ValueError(f"Unkown type={pool_type!r}")
    N, C, H, W = x.shape
    OH, OW = output_size
    NC, HW, OHOW = N * C, H * W, OH * OW

    c_blk, vmem_limit = _choose_channel_block(NC, HW, OHOW, x.dtype.itemsize)
    nc_pad = _round_up(NC, c_blk)
    grid = (nc_pad // c_blk,)

    # channels-first, spatially-flattened layout: a FREE reshape of NCHW
    # (no transpose / extra HBM pass).
    x2 = x.reshape(NC, HW)
    if nc_pad != NC:
        x2 = jnp.pad(x2, ((0, nc_pad - NC), (0, 0)))

    hb = _window_bounds(H, OH)
    wb = _window_bounds(W, OW)
    mask = jnp.kron(_mask01(H, OH), _mask01(W, OW))  # (OH*OW, H*W) f32 0/1

    compiler_params = pltpu.CompilerParams(
        dimension_semantics=("parallel",),
        vmem_limit_bytes=vmem_limit,
    )
    # TODO(synk): for very large H*W (e.g. 224x224 inputs) add a reduction grid
    # axis over H*W (f32 accumulator + pl.when init/finalize) or the separable
    # per-axis two-matmul form so the mask and the (c_blk, H*W) input block
    # always fit in scoped VMEM.

    if pool_type == "avg":
        counts = jnp.asarray(
            [[(eh - sh) * (ew - sw) for (sh, eh) in hb for (sw, ew) in wb]],
            dtype=jnp.float32,
        )  # (1, OH*OW) exact integer window sizes
        inv = 1.0 / counts
        maskT = mask.T.astype(x.dtype)  # (H*W, OH*OW)
        precision = (
            lax.Precision.HIGHEST if x.dtype == jnp.float32 else lax.Precision.DEFAULT
        )
        kernel = functools.partial(_avg_kernel, precision=precision)
        out = pl.pallas_call(
            kernel,
            out_shape=jax.ShapeDtypeStruct((nc_pad, OHOW), x.dtype),
            grid_spec=pltpu.PrefetchScalarGridSpec(
                num_scalar_prefetch=0,
                grid=grid,
                in_specs=[
                    pl.BlockSpec((HW, OHOW), lambda i: (0, 0)),
                    pl.BlockSpec((1, OHOW), lambda i: (0, 0)),
                    pl.BlockSpec((c_blk, HW), lambda i: (i, 0)),
                ],
                out_specs=pl.BlockSpec((c_blk, OHOW), lambda i: (i, 0)),
            ),
            compiler_params=compiler_params,
        )(maskT, inv, x2)
    else:  # max
        if jnp.issubdtype(x.dtype, jnp.floating):
            neg = float("-inf")
        else:
            neg = int(jnp.iinfo(x.dtype).min)
        kernel = functools.partial(_max_kernel, n_windows=OHOW, neg=neg)
        out = pl.pallas_call(
            kernel,
            out_shape=jax.ShapeDtypeStruct((nc_pad, OHOW), x.dtype),
            grid_spec=pltpu.PrefetchScalarGridSpec(
                num_scalar_prefetch=0,
                grid=grid,
                in_specs=[
                    pl.BlockSpec((OHOW, HW), lambda i: (0, 0)),
                    pl.BlockSpec((c_blk, HW), lambda i: (i, 0)),
                ],
                out_specs=pl.BlockSpec((c_blk, OHOW), lambda i: (i, 0)),
            ),
            compiler_params=compiler_params,
        )(mask, x2)

    return out[:NC].reshape(N, C, OH, OW)  # drop channel padding, back to NCHW


# ---------------------------------------------------------------------------
# pure-JAX reference (explicit per-window mean/max, PyTorch semantics)
# ---------------------------------------------------------------------------
def _ref_adaptive_pool2d(x, output_size, pool_type):
    N, C, H, W = x.shape
    OH, OW = output_size
    hb = _window_bounds(H, OH)
    wb = _window_bounds(W, OW)
    rows = []
    for (sh, eh) in hb:
        cols = []
        for (sw, ew) in wb:
            win = x[:, :, sh:eh, sw:ew]
            if pool_type == "avg":
                cols.append(jnp.mean(win, axis=(2, 3)))
            else:
                cols.append(jnp.max(win, axis=(2, 3)))
        rows.append(jnp.stack(cols, axis=-1))   # (N, C, OW)
    return jnp.stack(rows, axis=-2)             # (N, C, OH, OW)


if __name__ == "__main__":
    key = jax.random.PRNGKey(0)
    x = jax.random.normal(key, (2, 4, 16, 16), dtype=jnp.float32)
    output_size = (4, 4)

    ok = True
    for pool_type in ("avg", "max"):
        got = jax.block_until_ready(adaptive_pool2d(x, output_size, pool_type))
        want = _ref_adaptive_pool2d(x, output_size, pool_type)
        if got.shape != (2, 4, 4, 4) or not jnp.allclose(
            got, want, atol=1e-5, rtol=1e-5
        ):
            ok = False

    if ok:
        print("KERNEL_OK")
</pallas_src>

<mosaic_0001>
module attributes {stable_mosaic.version = 11 : i64} {
  func.func @_avg_kernel(%arg0: i32, %arg1: memref<256x16xf32, #tpu.memory_space<vmem>>, %arg2: memref<1x16xf32, #tpu.memory_space<vmem>>, %arg3: memref<128x256xf32, #tpu.memory_space<vmem>>, %arg4: memref<128x16xf32, #tpu.memory_space<vmem>>) attributes {dimension_semantics = [#tpu.dimension_semantics<parallel>], iteration_bounds = array<i64: 1>, scalar_prefetch = 0 : i64, scratch_operands = 0 : i64, tpu.core_type = #tpu.core_type<tc>, window_params = [{pipeline_mode = #tpu.pipeline_mode<synchronous>, transform_indices = @transform_0, window_bounds = array<i64: 256, 16>}, {pipeline_mode = #tpu.pipeline_mode<synchronous>, transform_indices = @transform_1, window_bounds = array<i64: 1, 16>}, {transform_indices = @transform_2, window_bounds = array<i64: 128, 256>}, {transform_indices = @transform_3, window_bounds = array<i64: 128, 16>}]} {
    %c0 = arith.constant 0 : index
    %c0_0 = arith.constant 0 : index
    %0 = vector.load %arg3[%c0, %c0_0] : memref<128x256xf32, #tpu.memory_space<vmem>>, vector<128x256xf32>
    %c0_1 = arith.constant 0 : index
    %c0_2 = arith.constant 0 : index
    %1 = vector.load %arg1[%c0_1, %c0_2] : memref<256x16xf32, #tpu.memory_space<vmem>>, vector<256x16xf32>
    %cst = arith.constant dense<0.000000e+00> : vector<128x16xf32>
    %2 = tpu.matmul %0, %1, %cst {dimension_numbers = #tpu.dot_dimension_numbers<[1], [0], [0], [1], [0, 0, 1, 1], [], []>, precision = #tpu.contract_precision<fp32>} : vector<128x256xf32>, vector<256x16xf32>, vector<128x16xf32> -> vector<128x16xf32>
    %c0_3 = arith.constant 0 : index
    %c0_4 = arith.constant 0 : index
    %3 = vector.load %arg2[%c0_3, %c0_4] : memref<1x16xf32, #tpu.memory_space<vmem>>, vector<1x16xf32>
    %4 = vector.broadcast %3 : vector<1x16xf32> to vector<128x16xf32>
    %5 = arith.mulf %2, %4 : vector<128x16xf32>
    %c0_5 = arith.constant 0 : index
    %c0_6 = arith.constant 0 : index
    %6 = vector.load %arg4[%c0_5, %c0_6] : memref<128x16xf32, #tpu.memory_space<vmem>>, vector<128x16xf32>
    tpu.vector_store %arg4[%c0_5, %c0_6], %5 {strides = array<i32>} : memref<128x16xf32, #tpu.memory_space<vmem>>, vector<128x16xf32>,
    return
  }
  func.func @transform_0(%arg0: i32) -> (i32, i32) {
    %c0_i32 = arith.constant 0 : i32
    %c0_i32_0 = arith.constant 0 : i32
    %c0_i32_1 = arith.constant 0 : i32
    return %c0_i32, %c0_i32_0 : i32, i32
  }
  func.func @transform_1(%arg0: i32) -> (i32, i32) {
    %c0_i32 = arith.constant 0 : i32
    %c0_i32_0 = arith.constant 0 : i32
    %c0_i32_1 = arith.constant 0 : i32
    return %c0_i32, %c0_i32_0 : i32, i32
  }
  func.func @transform_2(%arg0: i32) -> (i32, i32) {
    %c0_i32 = arith.constant 0 : i32
    %c0_i32_0 = arith.constant 0 : i32
    return %arg0, %c0_i32 : i32, i32
  }
  func.func @transform_3(%arg0: i32) -> (i32, i32) {
    %c0_i32 = arith.constant 0 : i32
    %c0_i32_0 = arith.constant 0 : i32
    return %arg0, %c0_i32 : i32, i32
  }
}

</mosaic_0001>

<llo_original>
// kernel: tpu_custom_call.1
$region0: #{tpu_custom_call.1}
  #allocation0 [shape = 'u32[]', space=smem, size = 0x4, offset = 0x4, fixed_abs, tag = 'smem constant byte address 0x4 - core index']
  #allocation1 [shape = 'u32[72,128]{1,0:T(1,128)}', space=vmem, size = 0x9000, scoped, tag = 'internal scratch']
  %s0 = inlined_call_operand.vmem [shape: f32[256,16], index: 0, kind: input, shape index: {}]
  %s1 = inlined_call_operand.vmem [shape: f32[1,16], index: 1, kind: input, shape index: {}]
  %s2 = inlined_call_operand.vmem [shape: f32[128,256], index: 2, kind: input, shape index: {}]
  %s3 = inlined_call_operand.vmem [shape: f32[128,16], index: 3, kind: output, shape index: {}]
  %s4 = sld [smem:[#allocation0]]
  $region22: #{tpu_custom_call.1} parent=0
    _
  %s6 = ssub.s32 1, %s4
  %s7 = scalar_select 0, %s6, %s4
  // Predicated region
  $region2: #{tpu_custom_call.1} parent=0 // pred_check
    _
  $region3: #{tpu_custom_call.1} parent=0 // pred_check_branch
    %9 = sbr.rel (0) target = $region5
  $region4: #{tpu_custom_call.1} parent=0 // pred_region
    _
  $region5: #{tpu_custom_call.1} parent=0 // pred_fallthru
    _
  // Predicated region
  $region6: #{tpu_custom_call.1} parent=0 // pred_check
    _
  $region7: #{tpu_custom_call.1} parent=0 // pred_check_branch
    %11 = sbr.rel (0) target = $region9
  $region8: #{tpu_custom_call.1} parent=0 // pred_region
    _
  $region9: #{tpu_custom_call.1} parent=0 // pred_fallthru
    _
  // Predicated region
  $region10: #{tpu_custom_call.1} parent=0 // pred_check
    _
  $region11: #{tpu_custom_call.1} parent=0 // pred_check_branch
    %13 = sbr.rel (0) target = $region13
  $region12: #{tpu_custom_call.1} parent=0 // pred_region
    _
  $region13: #{tpu_custom_call.1} parent=0 // pred_fallthru
    _
  %v14 = vld [vmem:[%s2] sm:$0xff]
  %v15 = vld [vmem:[%s2 + $0x8] sm:$0xff]
  %v16 = vld [vmem:[%s2 + $0x10] sm:$0xff]
  %v17 = vld [vmem:[%s2 + $0x18] sm:$0xff]
  %v18 = vld [vmem:[%s2 + $0x20] sm:$0xff]
  %v19 = vld [vmem:[%s2 + $0x28] sm:$0xff]
  %v20 = vld [vmem:[%s2 + $0x30] sm:$0xff]
  %v21 = vld [vmem:[%s2 + $0x38] sm:$0xff]
  %v22 = vld [vmem:[%s2 + $0x40] sm:$0xff]
  %v23 = vld [vmem:[%s2 + $0x48] sm:$0xff]
  %v24 = vld [vmem:[%s2 + $0x50] sm:$0xff]
  %v25 = vld [vmem:[%s2 + $0x58] sm:$0xff]
  %v26 = vld [vmem:[%s2 + $0x60] sm:$0xff]
  %v27 = vld [vmem:[%s2 + $0x68] sm:$0xff]
  %v28 = vld [vmem:[%s2 + $0x70] sm:$0xff]
  %v29 = vld [vmem:[%s2 + $0x78] sm:$0xff]
  %v30 = vld [vmem:[%s2 + $0x80] sm:$0xff]
  %v31 = vld [vmem:[%s2 + $0x88] sm:$0xff]
  %v32 = vld [vmem:[%s2 + $0x90] sm:$0xff]
  %v33 = vld [vmem:[%s2 + $0x98] sm:$0xff]
  %v34 = vld [vmem:[%s2 + $0xa0] sm:$0xff]
  %v35 = vld [vmem:[%s2 + $0xa8] sm:$0xff]
  %v36 = vld [vmem:[%s2 + $0xb0] sm:$0xff]
  %v37 = vld [vmem:[%s2 + $0xb8] sm:$0xff]
  %v38 = vld [vmem:[%s2 + $0xc0] sm:$0xff]
  %v39 = vld [vmem:[%s2 + $0xc8] sm:$0xff]
  %v40 = vld [vmem:[%s2 + $0xd0] sm:$0xff]
  %v41 = vld [vmem:[%s2 + $0xd8] sm:$0xff]
  %v42 = vld [vmem:[%s2 + $0xe0] sm:$0xff]
  %v43 = vld [vmem:[%s2 + $0xe8] sm:$0xff]
  %v44 = vld [vmem:[%s2 + $0xf0] sm:$0xff]
  %v45 = vld [vmem:[%s2 + $0xf8] sm:$0xff]
  %v46 = vld [vmem:[%s0] sm:$0xff]
  %v47 = vld [vmem:[%s0 + $0x8] sm:$0xff]
  %v48 = vld [vmem:[%s0 + $0x10] sm:$0xff]
  %v49 = vld [vmem:[%s0 + $0x18] sm:$0xff]
  %v50 = vld [vmem:[%s0 + $0x20] sm:$0xff]
  %v51 = vld [vmem:[%s0 + $0x28] sm:$0xff]
  %v52 = vld [vmem:[%s0 + $0x30] sm:$0xff]
  %v53 = vld [vmem:[%s0 + $0x38] sm:$0xff]
  %v54 = vld [vmem:[%s0 + $0x40] sm:$0xff]
  %v55 = vld [vmem:[%s0 + $0x48] sm:$0xff]
  %v56 = vld [vmem:[%s0 + $0x50] sm:$0xff]
  %v57 = vld [vmem:[%s0 + $0x58] sm:$0xff]
  %v58 = vld [vmem:[%s0 + $0x60] sm:$0xff]
  %v59 = vld [vmem:[%s0 + $0x68] sm:$0xff]
  %v60 = vld [vmem:[%s0 + $0x70] sm:$0xff]
  %v61 = vld [vmem:[%s0 + $0x78] sm:$0xff]
  %v62 = vld [vmem:[%s0 + $0x80] sm:$0xff]
  %v63 = vld [vmem:[%s0 + $0x88] sm:$0xff]
  %v64 = vld [vmem:[%s0 + $0x90] sm:$0xff]
  %v65 = vld [vmem:[%s0 + $0x98] sm:$0xff]
  %v66 = vld [vmem:[%s0 + $0xa0] sm:$0xff]
  %v67 = vld [vmem:[%s0 + $0xa8] sm:$0xff]
  %v68 = vld [vmem:[%s0 + $0xb0] sm:$0xff]
  %v69 = vld [vmem:[%s0 + $0xb8] sm:$0xff]
  %v70 = vld [vmem:[%s0 + $0xc0] sm:$0xff]
  %v71 = vld [vmem:[%s0 + $0xc8] sm:$0xff]
  %v72 = vld [vmem:[%s0 + $0xd0] sm:$0xff]
  %v73 = vld [vmem:[%s0 + $0xd8] sm:$0xff]
  %v74 = vld [vmem:[%s0 + $0xe0] sm:$0xff]
  %v75 = vld [vmem:[%s0 + $0xe8] sm:$0xff]
  %v76 = vld [vmem:[%s0 + $0xf0] sm:$0xff]
  %v77 = vld [vmem:[%s0 + $0xf8] sm:$0xff]
  %v78 = vand.u32 %v61, 4294901760
  %79 = vmatpush.msra.mxu0 %v78
  %v80 = vand.u32 %v60, 4294901760
  %81 = vmatpush.msra.mxu0 %v80
  %v82 = vand.u32 %v59, 4294901760
  %83 = vmatpush.msra.mxu0 %v82
  %v84 = vand.u32 %v58, 4294901760
  %85 = vmatpush.msra.mxu0 %v84
  %v86 = vand.u32 %v57, 4294901760
  %87 = vmatpush.msra.mxu0 %v86
  %v88 = vand.u32 %v56, 4294901760
  %89 = vmatpush.msra.mxu0 %v88
  %v90 = vand.u32 %v55, 4294901760
  %91 = vmatpush.msra.mxu0 %v90
  %v92 = vand.u32 %v54, 4294901760
  %93 = vmatpush.msra.mxu0 %v92
  %v94 = vand.u32 %v53, 4294901760
  %95 = vmatpush.msra.mxu0 %v94
  %v96 = vand.u32 %v52, 4294901760
  %97 = vmatpush.msra.mxu0 %v96
  %v98 = vand.u32 %v51, 4294901760
  %99 = vmatpush.msra.mxu0 %v98
  %v100 = vand.u32 %v50, 4294901760
  %101 = vmatpush.msra.mxu0 %v100
  %v102 = vand.u32 %v49, 4294901760
  %103 = vmatpush.msra.mxu0 %v102
  %v104 = vand.u32 %v48, 4294901760
  %105 = vmatpush.msra.mxu0 %v104
  %v106 = vand.u32 %v47, 4294901760
  %107 = vmatpush.msra.mxu0 %v106
  %v108 = vand.u32 %v46, 4294901760
  %109 = vmatpush.msra.mxu0 %v108
  %v110 = vand.u32 %v14, 4294901760
  %v111 = vsub.f32 %v14, %v110
  %v112 = vand.u32 %v111, 4294901760
  %v113 = vsub.f32 %v111, %v112
  %v114 = vand.u32 %v113, 4294901760
  %115 = vmatmul.f32.gmra.mxu0 %v114
  %v116 = vpop.f32.mrf.mxu0
  %v117 = vadd.f32 0.0, %v116
  %v118 = vand.u32 %v16, 4294901760
  %v119 = vsub.f32 %v16, %v118
  %v120 = vand.u32 %v119, 4294901760
  %v121 = vsub.f32 %v119, %v120
  %v122 = vand.u32 %v121, 4294901760
  %123 = vmatmul.f32.gmra.mxu0 %v122
  %v124 = vpop.f32.mrf.mxu0
  %v125 = vadd.f32 0.0, %v124
  %v126 = vand.u32 %v18, 4294901760
  %v127 = vsub.f32 %v18, %v126
  %v128 = vand.u32 %v127, 4294901760
  %v129 = vsub.f32 %v127, %v128
  %v130 = vand.u32 %v129, 4294901760
  %131 = vmatmul.f32.gmra.mxu0 %v130
  %v132 = vpop.f32.mrf.mxu0
  %v133 = vadd.f32 0.0, %v132
  %v134 = vand.u32 %v20, 4294901760
  %v135 = vsub.f32 %v20, %v134
  %v136 = vand.u32 %v135, 4294901760
  %v137 = vsub.f32 %v135, %v136
  %v138 = vand.u32 %v137, 4294901760
  %139 = vmatmul.f32.gmra.mxu0 %v138
  %v140 = vpop.f32.mrf.mxu0
  %v141 = vadd.f32 0.0, %v140
  %v142 = vand.u32 %v22, 4294901760
  %v143 = vsub.f32 %v22, %v142
  %v144 = vand.u32 %v143, 4294901760
  %v145 = vsub.f32 %v143, %v144
  %v146 = vand.u32 %v145, 4294901760
  %147 = vmatmul.f32.gmra.mxu0 %v146
  %v148 = vpop.f32.mrf.mxu0
  %v149 = vadd.f32 0.0, %v148
  %v150 = vand.u32 %v24, 4294901760
  %v151 = vsub.f32 %v24, %v150
  %v152 = vand.u32 %v151, 4294901760
  %v153 = vsub.f32 %v151, %v152
  %v154 = vand.u32 %v153, 4294901760
  %155 = vmatmul.f32.gmra.mxu0 %v154
  %v156 = vpop.f32.mrf.mxu0
  %v157 = vadd.f32 0.0, %v156
  %v158 = vand.u32 %v26, 4294901760
  %v159 = vsub.f32 %v26, %v158
  %v160 = vand.u32 %v159, 4294901760
  %v161 = vsub.f32 %v159, %v160
  %v162 = vand.u32 %v161, 4294901760
  %163 = vmatmul.f32.gmra.mxu0 %v162
  %v164 = vpop.f32.mrf.mxu0
  %v165 = vadd.f32 0.0, %v164
  %v166 = vand.u32 %v28, 4294901760
  %v167 = vsub.f32 %v28, %v166
  %v168 = vand.u32 %v167, 4294901760
  %v169 = vsub.f32 %v167, %v168
  %v170 = vand.u32 %v169, 4294901760
  %171 = vmatmul.f32.gmra.mxu0 %v170
  %v172 = vpop.f32.mrf.mxu0
  %v173 = vadd.f32 0.0, %v172
  %v174 = vand.u32 %v30, 4294901760
  %v175 = vsub.f32 %v30, %v174
  %v176 = vand.u32 %v175, 4294901760
  %v177 = vsub.f32 %v175, %v176
  %v178 = vand.u32 %v177, 4294901760
  %179 = vmatmul.f32.gmra.mxu0 %v178
  %v180 = vpop.f32.mrf.mxu0
  %v181 = vadd.f32 0.0, %v180
  %v182 = vand.u32 %v32, 4294901760
  %v183 = vsub.f32 %v32, %v182
  %v184 = vand.u32 %v183, 4294901760
  %v185 = vsub.f32 %v183, %v184
  %v186 = vand.u32 %v185, 4294901760
  %187 = vmatmul.f32.gmra.mxu0 %v186
  %v188 = vpop.f32.mrf.mxu0
  %v189 = vadd.f32 0.0, %v188
  %v190 = vand.u32 %v34, 4294901760
  %v191 = vsub.f32 %v34, %v190
  %v192 = vand.u32 %v191, 4294901760
  %v193 = vsub.f32 %v191, %v192
  %v194 = vand.u32 %v193, 4294901760
  %195 = vmatmul.f32.gmra.mxu0 %v194
  %v196 = vpop.f32.mrf.mxu0
  %v197 = vadd.f32 0.0, %v196
  %v198 = vand.u32 %v36, 4294901760
  %v199 = vsub.f32 %v36, %v198
  %v200 = vand.u32 %v199, 4294901760
  %v201 = vsub.f32 %v199, %v200
  %v202 = vand.u32 %v201, 4294901760
  %203 = vmatmul.f32.gmra.mxu0 %v202
  %v204 = vpop.f32.mrf.mxu0
  %v205 = vadd.f32 0.0, %v204
  %v206 = vand.u32 %v38, 4294901760
  %v207 = vsub.f32 %v38, %v206
  %v208 = vand.u32 %v207, 4294901760
  %v209 = vsub.f32 %v207, %v208
  %v210 = vand.u32 %v209, 4294901760
  %211 = vmatmul.f32.gmra.mxu0 %v210
  %v212 = vpop.f32.mrf.mxu0
  %v213 = vadd.f32 0.0, %v212
  %v214 = vand.u32 %v40, 4294901760
  %v215 = vsub.f32 %v40, %v214
  %v216 = vand.u32 %v215, 4294901760
  %v217 = vsub.f32 %v215, %v216
  %v218 = vand.u32 %v217, 4294901760
  %219 = vmatmul.f32.gmra.mxu0 %v218
  %v220 = vpop.f32.mrf.mxu0
  %v221 = vadd.f32 0.0, %v220
  %v222 = vand.u32 %v42, 4294901760
  %v223 = vsub.f32 %v42, %v222
  %v224 = vand.u32 %v223, 4294901760
  %v225 = vsub.f32 %v223, %v224
  %v226 = vand.u32 %v225, 4294901760
  %227 = vmatmul.f32.gmra.mxu0 %v226
  %v228 = vpop.f32.mrf.mxu0
  %v229 = vadd.f32 0.0, %v228
  %v230 = vand.u32 %v44, 4294901760
  %v231 = vsub.f32 %v44, %v230
  %v232 = vand.u32 %v231, 4294901760
  %v233 = vsub.f32 %v231, %v232
  %v234 = vand.u32 %v233, 4294901760
  %235 = vmatmul.f32.gmra.mxu0 %v234
  %v236 = vpop.f32.mrf.mxu0
  %v237 = vadd.f32 0.0, %v236
  %238 = vdwg.mxu0
  %v239 = vand.u32 %v61, 4294901760
  %v240 = vsub.f32 %v61, %v239
  %v241 = vand.u32 %v240, 4294901760
  %v242 = vsub.f32 %v240, %v241
  %v243 = vand.u32 %v242, 4294901760
  %244 = vmatpush.msra.mxu0 %v243
  %v245 = vand.u32 %v60, 4294901760
  %v246 = vsub.f32 %v60, %v245
  %v247 = vand.u32 %v246, 4294901760
  %v248 = vsub.f32 %v246, %v247
  %v249 = vand.u32 %v248, 4294901760
  %250 = vmatpush.msra.mxu0 %v249
  %v251 = vand.u32 %v59, 4294901760
  %v252 = vsub.f32 %v59, %v251
  %v253 = vand.u32 %v252, 4294901760
  %v254 = vsub.f32 %v252, %v253
  %v255 = vand.u32 %v254, 4294901760
  %256 = vmatpush.msra.mxu0 %v255
  %v257 = vand.u32 %v58, 4294901760
  %v258 = vsub.f32 %v58, %v257
  %v259 = vand.u32 %v258, 4294901760
  %v260 = vsub.f32 %v258, %v259
  %v261 = vand.u32 %v260, 4294901760
  %262 = vmatpush.msra.mxu0 %v261
  %v263 = vand.u32 %v57, 4294901760
  %v264 = vsub.f32 %v57, %v263
  %v265 = vand.u32 %v264, 4294901760
  %v266 = vsub.f32 %v264, %v265
  %v267 = vand.u32 %v266, 4294901760
  %268 = vmatpush.msra.mxu0 %v267
  %v269 = vand.u32 %v56, 4294901760
  %v270 = vsub.f32 %v56, %v269
  %v271 = vand.u32 %v270, 4294901760
  %v272 = vsub.f32 %v270, %v271
  %v273 = vand.u32 %v272, 4294901760
  %274 = vmatpush.msra.mxu0 %v273
  %v275 = vand.u32 %v55, 4294901760
  %v276 = vsub.f32 %v55, %v275
  %v277 = vand.u32 %v276, 4294901760
  %v278 = vsub.f32 %v276, %v277
  %v279 = vand.u32 %v278, 4294901760
  %280 = vmatpush.msra.mxu0 %v279
  %v281 = vand.u32 %v54, 4294901760
  %v282 = vsub.f32 %v54, %v281
  %v283 = vand.u32 %v282, 4294901760
  %v284 = vsub.f32 %v282, %v283
  %v285 = vand.u32 %v284, 4294901760
  %286 = vmatpush.msra.mxu0 %v285
  %v287 = vand.u32 %v53, 4294901760
  %v288 = vsub.f32 %v53, %v287
  %v289 = vand.u32 %v288, 4294901760
  %v290 = vsub.f32 %v288, %v289
  %v291 = vand.u32 %v290, 4294901760
  %292 = vmatpush.msra.mxu0 %v291
  %v293 = vand.u32 %v52, 4294901760
  %v294 = vsub.f32 %v52, %v293
  %v295 = vand.u32 %v294, 4294901760
  %v296 = vsub.f32 %v294, %v295
  %v297 = vand.u32 %v296, 4294901760
  %298 = vmatpush.msra.mxu0 %v297
  %v299 = vand.u32 %v51, 4294901760
  %v300 = vsub.f32 %v51, %v299
  %v301 = vand.u32 %v300, 4294901760
  %v302 = vsub.f32 %v300, %v301
  %v303 = vand.u32 %v302, 4294901760
  %304 = vmatpush.msra.mxu0 %v303
  %v305 = vand.u32 %v50, 4294901760
  %v306 = vsub.f32 %v50, %v305
  %v307 = vand.u32 %v306, 4294901760
  %v308 = vsub.f32 %v306, %v307
  %v309 = vand.u32 %v308, 4294901760
  %310 = vmatpush.msra.mxu0 %v309
  %v311 = vand.u32 %v49, 4294901760
  %v312 = vsub.f32 %v49, %v311
  %v313 = vand.u32 %v312, 4294901760
  %v314 = vsub.f32 %v312, %v313
  %v315 = vand.u32 %v314, 4294901760
  %316 = vmatpush.msra.mxu0 %v315
  %v317 = vand.u32 %v48, 4294901760
  %v318 = vsub.f32 %v48, %v317
  %v319 = vand.u32 %v318, 4294901760
  %v320 = vsub.f32 %v318, %v319
  %v321 = vand.u32 %v320, 4294901760
  %322 = vmatpush.msra.mxu0 %v321
  %v323 = vand.u32 %v47, 4294901760
  %v324 = vsub.f32 %v47, %v323
  %v325 = vand.u32 %v324, 4294901760
  %v326 = vsub.f32 %v324, %v325
  %v327 = vand.u32 %v326, 4294901760
  %328 = vmatpush.msra.mxu0 %v327
  %v329 = vand.u32 %v46, 4294901760
  %v330 = vsub.f32 %v46, %v329
  %v331 = vand.u32 %v330, 4294901760
  %v332 = vsub.f32 %v330, %v331
  %v333 = vand.u32 %v332, 4294901760
  %334 = vmatpush.msra.mxu0 %v333
  %v335 = vand.u32 %v14, 4294901760
  %336 = vmatmul.f32.gmra.mxu0 %v335
  %v337 = vpop.f32.mrf.mxu0
  %v338 = vadd.f32 %v117, %v337
  %v339 = vand.u32 %v16, 4294901760
  %340 = vmatmul.f32.gmra.mxu0 %v339
  %v341 = vpop.f32.mrf.mxu0
  %v342 = vadd.f32 %v125, %v341
  %v343 = vand.u32 %v18, 4294901760
  %344 = vmatmul.f32.gmra.mxu0 %v343
  %v345 = vpop.f32.mrf.mxu0
  %v346 = vadd.f32 %v133, %v345
  %v347 = vand.u32 %v20, 4294901760
  %348 = vmatmul.f32.gmra.mxu0 %v347
  %v349 = vpop.f32.mrf.mxu0
  %v350 = vadd.f32 %v141, %v349
  %v351 = vand.u32 %v22, 4294901760
  %352 = vmatmul.f32.gmra.mxu0 %v351
  %v353 = vpop.f32.mrf.mxu0
  %v354 = vadd.f32 %v149, %v353
  %v355 = vand.u32 %v24, 4294901760
  %356 = vmatmul.f32.gmra.mxu0 %v355
  %v357 = vpop.f32.mrf.mxu0
  %v358 = vadd.f32 %v157, %v357
  %v359 = vand.u32 %v26, 4294901760
  %360 = vmatmul.f32.gmra.mxu0 %v359
  %v361 = vpop.f32.mrf.mxu0
  %v362 = vadd.f32 %v165, %v361
  %v363 = vand.u32 %v28, 4294901760
  %364 = vmatmul.f32.gmra.mxu0 %v363
  %v365 = vpop.f32.mrf.mxu0
  %v366 = vadd.f32 %v173, %v365
  %v367 = vand.u32 %v30, 4294901760
  %368 = vmatmul.f32.gmra.mxu0 %v367
  %v369 = vpop.f32.mrf.mxu0
  %v370 = vadd.f32 %v181, %v369
  %v371 = vand.u32 %v32, 4294901760
  %372 = vmatmul.f32.gmra.mxu0 %v371
  %v373 = vpop.f32.mrf.mxu0
  %v374 = vadd.f32 %v189, %v373
  %v375 = vand.u32 %v34, 4294901760
  %376 = vmatmul.f32.gmra.mxu0 %v375
  %v377 = vpop.f32.mrf.mxu0
  %v378 = vadd.f32 %v197, %v377
  %v379 = vand.u32 %v36, 4294901760
  %380 = vmatmul.f32.gmra.mxu0 %v379
  %v381 = vpop.f32.mrf.mxu0
  %v382 = vadd.f32 %v205, %v381
  %v383 = vand.u32 %v38, 4294901760
  %384 = vmatmul.f32.gmra.mxu0 %v383
  %v385 = vpop.f32.mrf.mxu0
  %v386 = vadd.f32 %v213, %v385
  %v387 = vand.u32 %v40, 4294901760
  %388 = vmatmul.f32.gmra.mxu0 %v387
  %v389 = vpop.f32.mrf.mxu0
  %v390 = vadd.f32 %v221, %v389
  %v391 = vand.u32 %v42, 4294901760
  %392 = vmatmul.f32.gmra.mxu0 %v391
  %v393 = vpop.f32.mrf.mxu0
  %v394 = vadd.f32 %v229, %v393
  %v395 = vand.u32 %v44, 4294901760
  %396 = vmatmul.f32.gmra.mxu0 %v395
  %v397 = vpop.f32.mrf.mxu0
  %v398 = vadd.f32 %v237, %v397
  %399 = vdwg.mxu0
  %v400 = vand.u32 %v61, 4294901760
  %v401 = vsub.f32 %v61, %v400
  %402 = vmatpush.msra.mxu0 %v401
  %v403 = vand.u32 %v60, 4294901760
  %v404 = vsub.f32 %v60, %v403
  %405 = vmatpush.msra.mxu0 %v404
  %v406 = vand.u32 %v59, 4294901760
  %v407 = vsub.f32 %v59, %v406
  %408 = vmatpush.msra.mxu0 %v407
  %v409 = vand.u32 %v58, 4294901760
  %v410 = vsub.f32 %v58, %v409
  %411 = vmatpush.msra.mxu0 %v410
  %v412 = vand.u32 %v57, 4294901760
  %v413 = vsub.f32 %v57, %v412
  %414 = vmatpush.msra.mxu0 %v413
  %v415 = vand.u32 %v56, 4294901760
  %v416 = vsub.f32 %v56, %v415
  %417 = vmatpush.msra.mxu0 %v416
  %v418 = vand.u32 %v55, 4294901760
  %v419 = vsub.f32 %v55, %v418
  %420 = vmatpush.msra.mxu0 %v419
  %v421 = vand.u32 %v54, 4294901760
  %v422 = vsub.f32 %v54, %v421
  %423 = vmatpush.msra.mxu0 %v422
  %v424 = vand.u32 %v53, 4294901760
  %v425 = vsub.f32 %v53, %v424
  %426 = vmatpush.msra.mxu0 %v425
  %v427 = vand.u32 %v52, 4294901760
  %v428 = vsub.f32 %v52, %v427
  %429 = vmatpush.msra.mxu0 %v428
  %v430 = vand.u32 %v51, 4294901760
  %v431 = vsub.f32 %v51, %v430
  %432 = vmatpush.msra.mxu0 %v431
  %v433 = vand.u32 %v50, 4294901760
  %v434 = vsub.f32 %v50, %v433
  %435 = vmatpush.msra.mxu0 %v434
  %v436 = vand.u32 %v49, 4294901760
  %v437 = vsub.f32 %v49, %v436
  %438 = vmatpush.msra.mxu0 %v437
  %v439 = vand.u32 %v48, 4294901760
  %v440 = vsub.f32 %v48, %v439
  %441 = vmatpush.msra.mxu0 %v440
  %v442 = vand.u32 %v47, 4294901760
  %v443 = vsub.f32 %v47, %v442
  %444 = vmatpush.msra.mxu0 %v443
  %v445 = vand.u32 %v46, 4294901760
  %v446 = vsub.f32 %v46, %v445
  %447 = vmatpush.msra.mxu0 %v446
  %v448 = vand.u32 %v14, 4294901760
  %v449 = vsub.f32 %v14, %v448
  %450 = vmatmul.f32.gmra.mxu0 %v449
  %v451 = vpop.f32.mrf.mxu0
  %v452 = vadd.f32 %v338, %v451
  %v453 = vand.u32 %v16, 4294901760
  %v454 = vsub.f32 %v16, %v453
  %455 = vmatmul.f32.gmra.mxu0 %v454
  %v456 = vpop.f32.mrf.mxu0
  %v457 = vadd.f32 %v342, %v456
  %v458 = vand.u32 %v18, 4294901760
  %v459 = vsub.f32 %v18, %v458
  %460 = vmatmul.f32.gmra.mxu0 %v459
  %v461 = vpop.f32.mrf.mxu0
  %v462 = vadd.f32 %v346, %v461
  %v463 = vand.u32 %v20, 4294901760
  %v464 = vsub.f32 %v20, %v463
  %465 = vmatmul.f32.gmra.mxu0 %v464
  %v466 = vpop.f32.mrf.mxu0
  %v467 = vadd.f32 %v350, %v466
  %v468 = vand.u32 %v22, 4294901760
  %v469 = vsub.f32 %v22, %v468
  %470 = vmatmul.f32.gmra.mxu0 %v469
  %v471 = vpop.f32.mrf.mxu0
  %v472 = vadd.f32 %v354, %v471
  %v473 = vand.u32 %v24, 4294901760
  %v474 = vsub.f32 %v24, %v473
  %475 = vmatmul.f32.gmra.mxu0 %v474
  %v476 = vpop.f32.mrf.mxu0
  %v477 = vadd.f32 %v358, %v476
  %v478 = vand.u32 %v26, 4294901760
  %v479 = vsub.f32 %v26, %v478
  %480 = vmatmul.f32.gmra.mxu0 %v479
  %v481 = vpop.f32.mrf.mxu0
  %v482 = vadd.f32 %v362, %v481
  %v483 = vand.u32 %v28, 4294901760
  %v484 = vsub.f32 %v28, %v483
  %485 = vmatmul.f32.gmra.mxu0 %v484
  %v486 = vpop.f32.mrf.mxu0
  %v487 = vadd.f32 %v366, %v486
  %v488 = vand.u32 %v30, 4294901760
  %v489 = vsub.f32 %v30, %v488
  %490 = vmatmul.f32.gmra.mxu0 %v489
  %v491 = vpop.f32.mrf.mxu0
  %v492 = vadd.f32 %v370, %v491
  %v493 = vand.u32 %v32, 4294901760
  %v494 = vsub.f32 %v32, %v493
  %495 = vmatmul.f32.gmra.mxu0 %v494
  %v496 = vpop.f32.mrf.mxu0
  %v497 = vadd.f32 %v374, %v496
  %v498 = vand.u32 %v34, 4294901760
  %v499 = vsub.f32 %v34, %v498
  %500 = vmatmul.f32.gmra.mxu0 %v499
  %v501 = vpop.f32.mrf.mxu0
  %v502 = vadd.f32 %v378, %v501
  %v503 = vand.u32 %v36, 4294901760
  %v504 = vsub.f32 %v36, %v503
  %505 = vmatmul.f32.gmra.mxu0 %v504
  %v506 = vpop.f32.mrf.mxu0
  %v507 = vadd.f32 %v382, %v506
  %v508 = vand.u32 %v38, 4294901760
  %v509 = vsub.f32 %v38, %v508
  %510 = vmatmul.f32.gmra.mxu0 %v509
  %v511 = vpop.f32.mrf.mxu0
  %v512 = vadd.f32 %v386, %v511
  %v513 = vand.u32 %v40, 4294901760
  %v514 = vsub.f32 %v40, %v513
  %515 = vmatmul.f32.gmra.mxu0 %v514
  %v516 = vpop.f32.mrf.mxu0
  %v517 = vadd.f32 %v390, %v516
  %v518 = vand.u32 %v42, 4294901760
  %v519 = vsub.f32 %v42, %v518
  %520 = vmatmul.f32.gmra.mxu0 %v519
  %v521 = vpop.f32.mrf.mxu0
  %v522 = vadd.f32 %v394, %v521
  %v523 = vand.u32 %v44, 4294901760
  %v524 = vsub.f32 %v44, %v523
  %525 = vmatmul.f32.gmra.mxu0 %v524
  %v526 = vpop.f32.mrf.mxu0
  %v527 = vadd.f32 %v398, %v526
  %528 = vdwg.mxu0
  %v529 = vand.u32 %v61, 4294901760
  %530 = vmatpush.msra.mxu0 %v529
  %v531 = vand.u32 %v60, 4294901760
  %532 = vmatpush.msra.mxu0 %v531
  %v533 = vand.u32 %v59, 4294901760
  %534 = vmatpush.msra.mxu0 %v533
  %v535 = vand.u32 %v58, 4294901760
  %536 = vmatpush.msra.mxu0 %v535
  %v537 = vand.u32 %v57, 4294901760
  %538 = vmatpush.msra.mxu0 %v537
  %v539 = vand.u32 %v56, 4294901760
  %540 = vmatpush.msra.mxu0 %v539
  %v541 = vand.u32 %v55, 4294901760
  %542 = vmatpush.msra.mxu0 %v541
  %v543 = vand.u32 %v54, 4294901760
  %544 = vmatpush.msra.mxu0 %v543
  %v545 = vand.u32 %v53, 4294901760
  %546 = vmatpush.msra.mxu0 %v545
  %v547 = vand.u32 %v52, 4294901760
  %548 = vmatpush.msra.mxu0 %v547
  %v549 = vand.u32 %v51, 4294901760
  %550 = vmatpush.msra.mxu0 %v549
  %v551 = vand.u32 %v50, 4294901760
  %552 = vmatpush.msra.mxu0 %v551
  %v553 = vand.u32 %v49, 4294901760
  %554 = vmatpush.msra.mxu0 %v553
  %v555 = vand.u32 %v48, 4294901760
  %556 = vmatpush.msra.mxu0 %v555
  %v557 = vand.u32 %v47, 4294901760
  %558 = vmatpush.msra.mxu0 %v557
  %v559 = vand.u32 %v46, 4294901760
  %560 = vmatpush.msra.mxu0 %v559
  %v561 = vand.u32 %v14, 4294901760
  %v562 = vsub.f32 %v14, %v561
  %v563 = vand.u32 %v562, 4294901760
  %564 = vmatmul.f32.gmra.mxu0 %v563
  %v565 = vpop.f32.mrf.mxu0
  %v566 = vadd.f32 %v452, %v565
  %v567 = vand.u32 %v16, 4294901760
  %v568 = vsub.f32 %v16, %v567
  %v569 = vand.u32 %v568, 4294901760
  %570 = vmatmul.f32.gmra.mxu0 %v569
  %v571 = vpop.f32.mrf.mxu0
  %v572 = vadd.f32 %v457, %v571
  %v573 = vand.u32 %v18, 4294901760
  %v574 = vsub.f32 %v18, %v573
  %v575 = vand.u32 %v574, 4294901760
  %576 = vmatmul.f32.gmra.mxu0 %v575
  %v577 = vpop.f32.mrf.mxu0
  %v578 = vadd.f32 %v462, %v577
  %v579 = vand.u32 %v20, 4294901760
  %v580 = vsub.f32 %v20, %v579
  %v581 = vand.u32 %v580, 4294901760
  %582 = vmatmul.f32.gmra.mxu0 %v581
  %v583 = vpop.f32.mrf.mxu0
  %v584 = vadd.f32 %v467, %v583
  %v585 = vand.u32 %v22, 4294901760
  %v586 = vsub.f32 %v22, %v585
  %v587 = vand.u32 %v586, 4294901760
  %588 = vmatmul.f32.gmra.mxu0 %v587
  %v589 = vpop.f32.mrf.mxu0
  %v590 = vadd.f32 %v472, %v589
  %v591 = vand.u32 %v24, 4294901760
  %v592 = vsub.f32 %v24, %v591
  %v593 = vand.u32 %v592, 4294901760
  %594 = vmatmul.f32.gmra.mxu0 %v593
  %v595 = vpop.f32.mrf.mxu0
  %v596 = vadd.f32 %v477, %v595
  %v597 = vand.u32 %v26, 4294901760
  %v598 = vsub.f32 %v26, %v597
  %v599 = vand.u32 %v598, 4294901760
  %600 = vmatmul.f32.gmra.mxu0 %v599
  %v601 = vpop.f32.mrf.mxu0
  %v602 = vadd.f32 %v482, %v601
  %v603 = vand.u32 %v28, 4294901760
  %v604 = vsub.f32 %v28, %v603
  %v605 = vand.u32 %v604, 4294901760
  %606 = vmatmul.f32.gmra.mxu0 %v605
  %v607 = vpop.f32.mrf.mxu0
  %v608 = vadd.f32 %v487, %v607
  %v609 = vand.u32 %v30, 4294901760
  %v610 = vsub.f32 %v30, %v609
  %v611 = vand.u32 %v610, 4294901760
  %612 = vmatmul.f32.gmra.mxu0 %v611
  %v613 = vpop.f32.mrf.mxu0
  %v614 = vadd.f32 %v492, %v613
  %v615 = vand.u32 %v32, 4294901760
  %v616 = vsub.f32 %v32, %v615
  %v617 = vand.u32 %v616, 4294901760
  %618 = vmatmul.f32.gmra.mxu0 %v617
  %v619 = vpop.f32.mrf.mxu0
  %v620 = vadd.f32 %v497, %v619
  %v621 = vand.u32 %v34, 4294901760
  %v622 = vsub.f32 %v34, %v621
  %v623 = vand.u32 %v622, 4294901760
  %624 = vmatmul.f32.gmra.mxu0 %v623
  %v625 = vpop.f32.mrf.mxu0
  %v626 = vadd.f32 %v502, %v625
  %v627 = vand.u32 %v36, 4294901760
  %v628 = vsub.f32 %v36, %v627
  %v629 = vand.u32 %v628, 4294901760
  %630 = vmatmul.f32.gmra.mxu0 %v629
  %v631 = vpop.f32.mrf.mxu0
  %v632 = vadd.f32 %v507, %v631
  %v633 = vand.u32 %v38, 4294901760
  %v634 = vsub.f32 %v38, %v633
  %v635 = vand.u32 %v634, 4294901760
  %636 = vmatmul.f32.gmra.mxu0 %v635
  %v637 = vpop.f32.mrf.mxu0
  %v638 = vadd.f32 %v512, %v637
  %v639 = vand.u32 %v40, 4294901760
  %v640 = vsub.f32 %v40, %v639
  %v641 = vand.u32 %v640, 4294901760
  %642 = vmatmul.f32.gmra.mxu0 %v641
  %v643 = vpop.f32.mrf.mxu0
  %v644 = vadd.f32 %v517, %v643
  %v645 = vand.u32 %v42, 4294901760
  %v646 = vsub.f32 %v42, %v645
  %v647 = vand.u32 %v646, 4294901760
  %648 = vmatmul.f32.gmra.mxu0 %v647
  %v649 = vpop.f32.mrf.mxu0
  %v650 = vadd.f32 %v522, %v649
  %v651 = vand.u32 %v44, 4294901760
  %v652 = vsub.f32 %v44, %v651
  %v653 = vand.u32 %v652, 4294901760
  %654 = vmatmul.f32.gmra.mxu0 %v653
  %v655 = vpop.f32.mrf.mxu0
  %v656 = vadd.f32 %v527, %v655
  %657 = vdwg.mxu0
  %v658 = vand.u32 %v61, 4294901760
  %v659 = vsub.f32 %v61, %v658
  %v660 = vand.u32 %v659, 4294901760
  %661 = vmatpush.msra.mxu0 %v660
  %v662 = vand.u32 %v60, 4294901760
  %v663 = vsub.f32 %v60, %v662
  %v664 = vand.u32 %v663, 4294901760
  %665 = vmatpush.msra.mxu0 %v664
  %v666 = vand.u32 %v59, 4294901760
  %v667 = vsub.f32 %v59, %v666
  %v668 = vand.u32 %v667, 4294901760
  %669 = vmatpush.msra.mxu0 %v668
  %v670 = vand.u32 %v58, 4294901760
  %v671 = vsub.f32 %v58, %v670
  %v672 = vand.u32 %v671, 4294901760
  %673 = vmatpush.msra.mxu0 %v672
  %v674 = vand.u32 %v57, 4294901760
  %v675 = vsub.f32 %v57, %v674
  %v676 = vand.u32 %v675, 4294901760
  %677 = vmatpush.msra.mxu0 %v676
  %v678 = vand.u32 %v56, 4294901760
  %v679 = vsub.f32 %v56, %v678
  %v680 = vand.u32 %v679, 4294901760
  %681 = vmatpush.msra.mxu0 %v680
  %v682 = vand.u32 %v55, 4294901760
  %v683 = vsub.f32 %v55, %v682
  %v684 = vand.u32 %v683, 4294901760
  %685 = vmatpush.msra.mxu0 %v684
  %v686 = vand.u32 %v54, 4294901760
  %v687 = vsub.f32 %v54, %v686
  %v688 = vand.u32 %v687, 4294901760
  %689 = vmatpush.msra.mxu0 %v688
  %v690 = vand.u32 %v53, 4294901760
  %v691 = vsub.f32 %v53, %v690
  %v692 = vand.u32 %v691, 4294901760
  %693 = vmatpush.msra.mxu0 %v692
  %v694 = vand.u32 %v52, 4294901760
  %v695 = vsub.f32 %v52, %v694
  %v696 = vand.u32 %v695, 4294901760
  %697 = vmatpush.msra.mxu0 %v696
  %v698 = vand.u32 %v51, 4294901760
  %v699 = vsub.f32 %v51, %v698
  %v700 = vand.u32 %v699, 4294901760
  %701 = vmatpush.msra.mxu0 %v700
  %v702 = vand.u32 %v50, 4294901760
  %v703 = vsub.f32 %v50, %v702
  %v704 = vand.u32 %v703, 4294901760
  %705 = vmatpush.msra.mxu0 %v704
  %v706 = vand.u32 %v49, 4294901760
  %v707 = vsub.f32 %v49, %v706
  %v708 = vand.u32 %v707, 4294901760
  %709 = vmatpush.msra.mxu0 %v708
  %v710 = vand.u32 %v48, 4294901760
  %v711 = vsub.f32 %v48, %v710
  %v712 = vand.u32 %v711, 4294901760
  %713 = vmatpush.msra.mxu0 %v712
  %v714 = vand.u32 %v47, 4294901760
  %v715 = vsub.f32 %v47, %v714
  %v716 = vand.u32 %v715, 4294901760
  %717 = vmatpush.msra.mxu0 %v716
  %v718 = vand.u32 %v46, 4294901760
  %v719 = vsub.f32 %v46, %v718
  %v720 = vand.u32 %v719, 4294901760
  %721 = vmatpush.msra.mxu0 %v720
  %v722 = vand.u32 %v14, 4294901760
  %723 = vmatmul.f32.gmra.mxu0 %v722
  %v724 = vpop.f32.mrf.mxu0
  %v725 = vadd.f32 %v566, %v724
  %v726 = vand.u32 %v16, 4294901760
  %727 = vmatmul.f32.gmra.mxu0 %v726
  %v728 = vpop.f32.mrf.mxu0
  %v729 = vadd.f32 %v572, %v728
  %v730 = vand.u32 %v18, 4294901760
  %731 = vmatmul.f32.gmra.mxu0 %v730
  %v732 = vpop.f32.mrf.mxu0
  %v733 = vadd.f32 %v578, %v732
  %v734 = vand.u32 %v20, 4294901760
  %735 = vmatmul.f32.gmra.mxu0 %v734
  %v736 = vpop.f32.mrf.mxu0
  %v737 = vadd.f32 %v584, %v736
  %v738 = vand.u32 %v22, 4294901760
  %739 = vmatmul.f32.gmra.mxu0 %v738
  %v740 = vpop.f32.mrf.mxu0
  %v741 = vadd.f32 %v590, %v740
  %v742 = vand.u32 %v24, 4294901760
  %743 = vmatmul.f32.gmra.mxu0 %v742
  %v744 = vpop.f32.mrf.mxu0
  %v745 = vadd.f32 %v596, %v744
  %v746 = vand.u32 %v26, 4294901760
  %747 = vmatmul.f32.gmra.mxu0 %v746
  %v748 = vpop.f32.mrf.mxu0
  %v749 = vadd.f32 %v602, %v748
  %v750 = vand.u32 %v28, 4294901760
  %751 = vmatmul.f32.gmra.mxu0 %v750
  %v752 = vpop.f32.mrf.mxu0
  %v753 = vadd.f32 %v608, %v752
  %v754 = vand.u32 %v30, 4294901760
  %755 = vmatmul.f32.gmra.mxu0 %v754
  %v756 = vpop.f32.mrf.mxu0
  %v757 = vadd.f32 %v614, %v756
  %v758 = vand.u32 %v32, 4294901760
  %759 = vmatmul.f32.gmra.mxu0 %v758
  %v760 = vpop.f32.mrf.mxu0
  %v761 = vadd.f32 %v620, %v760
  %v762 = vand.u32 %v34, 4294901760
  %763 = vmatmul.f32.gmra.mxu0 %v762
  %v764 = vpop.f32.mrf.mxu0
  %v765 = vadd.f32 %v626, %v764
  %v766 = vand.u32 %v36, 4294901760
  %767 = vmatmul.f32.gmra.mxu0 %v766
  %v768 = vpop.f32.mrf.mxu0
  %v769 = vadd.f32 %v632, %v768
  %v770 = vand.u32 %v38, 4294901760
  %771 = vmatmul.f32.gmra.mxu0 %v770
  %v772 = vpop.f32.mrf.mxu0
  %v773 = vadd.f32 %v638, %v772
  %v774 = vand.u32 %v40, 4294901760
  %775 = vmatmul.f32.gmra.mxu0 %v774
  %v776 = vpop.f32.mrf.mxu0
  %v777 = vadd.f32 %v644, %v776
  %v778 = vand.u32 %v42, 4294901760
  %779 = vmatmul.f32.gmra.mxu0 %v778
  %v780 = vpop.f32.mrf.mxu0
  %v781 = vadd.f32 %v650, %v780
  %v782 = vand.u32 %v44, 4294901760
  %783 = vmatmul.f32.gmra.mxu0 %v782
  %v784 = vpop.f32.mrf.mxu0
  %v785 = vadd.f32 %v656, %v784
  %786 = vdwg.mxu0
  %v787 = vand.u32 %v61, 4294901760
  %788 = vmatpush.msra.mxu0 %v787
  %v789 = vand.u32 %v60, 4294901760
  %790 = vmatpush.msra.mxu0 %v789
  %v791 = vand.u32 %v59, 4294901760
  %792 = vmatpush.msra.mxu0 %v791
  %v793 = vand.u32 %v58, 4294901760
  %794 = vmatpush.msra.mxu0 %v793
  %v795 = vand.u32 %v57, 4294901760
  %796 = vmatpush.msra.mxu0 %v795
  %v797 = vand.u32 %v56, 4294901760
  %798 = vmatpush.msra.mxu0 %v797
  %v799 = vand.u32 %v55, 4294901760
  %800 = vmatpush.msra.mxu0 %v799
  %v801 = vand.u32 %v54, 4294901760
  %802 = vmatpush.msra.mxu0 %v801
  %v803 = vand.u32 %v53, 4294901760
  %804 = vmatpush.msra.mxu0 %v803
  %v805 = vand.u32 %v52, 4294901760
  %806 = vmatpush.msra.mxu0 %v805
  %v807 = vand.u32 %v51, 4294901760
  %808 = vmatpush.msra.mxu0 %v807
  %v809 = vand.u32 %v50, 4294901760
  %810 = vmatpush.msra.mxu0 %v809
  %v811 = vand.u32 %v49, 4294901760
  %812 = vmatpush.msra.mxu0 %v811
  %v813 = vand.u32 %v48, 4294901760
  %814 = vmatpush.msra.mxu0 %v813
  %v815 = vand.u32 %v47, 4294901760
  %816 = vmatpush.msra.mxu0 %v815
  %v817 = vand.u32 %v46, 4294901760
  %818 = vmatpush.msra.mxu0 %v817
  %v819 = vand.u32 %v14, 4294901760
  %820 = vmatmul.f32.gmra.mxu0 %v819
  %v821 = vpop.f32.mrf.mxu0
  %v822 = vadd.f32 %v725, %v821
  %v823 = vand.u32 %v16, 4294901760
  %824 = vmatmul.f32.gmra.mxu0 %v823
  %v825 = vpop.f32.mrf.mxu0
  %v826 = vadd.f32 %v729, %v825
  %v827 = vand.u32 %v18, 4294901760
  %828 = vmatmul.f32.gmra.mxu0 %v827
  %v829 = vpop.f32.mrf.mxu0
  %v830 = vadd.f32 %v733, %v829
  %v831 = vand.u32 %v20, 4294901760
  %832 = vmatmul.f32.gmra.mxu0 %v831
  %v833 = vpop.f32.mrf.mxu0
  %v834 = vadd.f32 %v737, %v833
  %v835 = vand.u32 %v22, 4294901760
  %836 = vmatmul.f32.gmra.mxu0 %v835
  %v837 = vpop.f32.mrf.mxu0
  %v838 = vadd.f32 %v741, %v837
  %v839 = vand.u32 %v24, 4294901760
  %840 = vmatmul.f32.gmra.mxu0 %v839
  %v841 = vpop.f32.mrf.mxu0
  %v842 = vadd.f32 %v745, %v841
  %v843 = vand.u32 %v26, 4294901760
  %844 = vmatmul.f32.gmra.mxu0 %v843
  %v845 = vpop.f32.mrf.mxu0
  %v846 = vadd.f32 %v749, %v845
  %v847 = vand.u32 %v28, 4294901760
  %848 = vmatmul.f32.gmra.mxu0 %v847
  %v849 = vpop.f32.mrf.mxu0
  %v850 = vadd.f32 %v753, %v849
  %v851 = vand.u32 %v30, 4294901760
  %852 = vmatmul.f32.gmra.mxu0 %v851
  %v853 = vpop.f32.mrf.mxu0
  %v854 = vadd.f32 %v757, %v853
  %v855 = vand.u32 %v32, 4294901760
  %856 = vmatmul.f32.gmra.mxu0 %v855
  %v857 = vpop.f32.mrf.mxu0
  %v858 = vadd.f32 %v761, %v857
  %v859 = vand.u32 %v34, 4294901760
  %860 = vmatmul.f32.gmra.mxu0 %v859
  %v861 = vpop.f32.mrf.mxu0
  %v862 = vadd.f32 %v765, %v861
  %v863 = vand.u32 %v36, 4294901760
  %864 = vmatmul.f32.gmra.mxu0 %v863
  %v865 = vpop.f32.mrf.mxu0
  %v866 = vadd.f32 %v769, %v865
  %v867 = vand.u32 %v38, 4294901760
  %868 = vmatmul.f32.gmra.mxu0 %v867
  %v869 = vpop.f32.mrf.mxu0
  %v870 = vadd.f32 %v773, %v869
  %v871 = vand.u32 %v40, 4294901760
  %872 = vmatmul.f32.gmra.mxu0 %v871
  %v873 = vpop.f32.mrf.mxu0
  %v874 = vadd.f32 %v777, %v873
  %v875 = vand.u32 %v42, 4294901760
  %876 = vmatmul.f32.gmra.mxu0 %v875
  %v877 = vpop.f32.mrf.mxu0
  %v878 = vadd.f32 %v781, %v877
  %v879 = vand.u32 %v44, 4294901760
  %880 = vmatmul.f32.gmra.mxu0 %v879
  %v881 = vpop.f32.mrf.mxu0
  %v882 = vadd.f32 %v785, %v881
  %883 = vdwg.mxu0
  %v884 = vand.u32 %v77, 4294901760
  %885 = vmatpush.msra.mxu0 %v884
  %v886 = vand.u32 %v76, 4294901760
  %887 = vmatpush.msra.mxu0 %v886
  %v888 = vand.u32 %v75, 4294901760
  %889 = vmatpush.msra.mxu0 %v888
  %v890 = vand.u32 %v74, 4294901760
  %891 = vmatpush.msra.mxu0 %v890
  %v892 = vand.u32 %v73, 4294901760
  %893 = vmatpush.msra.mxu0 %v892
  %v894 = vand.u32 %v72, 4294901760
  %895 = vmatpush.msra.mxu0 %v894
  %v896 = vand.u32 %v71, 4294901760
  %897 = vmatpush.msra.mxu0 %v896
  %v898 = vand.u32 %v70, 4294901760
  %899 = vmatpush.msra.mxu0 %v898
  %v900 = vand.u32 %v69, 4294901760
  %901 = vmatpush.msra.mxu0 %v900
  %v902 = vand.u32 %v68, 4294901760
  %903 = vmatpush.msra.mxu0 %v902
  %v904 = vand.u32 %v67, 4294901760
  %905 = vmatpush.msra.mxu0 %v904
  %v906 = vand.u32 %v66, 4294901760
  %907 = vmatpush.msra.mxu0 %v906
  %v908 = vand.u32 %v65, 4294901760
  %909 = vmatpush.msra.mxu0 %v908
  %v910 = vand.u32 %v64, 4294901760
  %911 = vmatpush.msra.mxu0 %v910
  %v912 = vand.u32 %v63, 4294901760
  %913 = vmatpush.msra.mxu0 %v912
  %v914 = vand.u32 %v62, 4294901760
  %915 = vmatpush.msra.mxu0 %v914
  %v916 = vand.u32 %v15, 4294901760
  %v917 = vsub.f32 %v15, %v916
  %v918 = vand.u32 %v917, 4294901760
  %v919 = vsub.f32 %v917, %v918
  %v920 = vand.u32 %v919, 4294901760
  %921 = vmatmul.f32.gmra.mxu0 %v920
  %v922 = vpop.f32.mrf.mxu0
  %v923 = vadd.f32 %v822, %v922
  %v924 = vand.u32 %v17, 4294901760
  %v925 = vsub.f32 %v17, %v924
  %v926 = vand.u32 %v925, 4294901760
  %v927 = vsub.f32 %v925, %v926
  %v928 = vand.u32 %v927, 4294901760
  %929 = vmatmul.f32.gmra.mxu0 %v928
  %v930 = vpop.f32.mrf.mxu0
  %v931 = vadd.f32 %v826, %v930
  %v932 = vand.u32 %v19, 4294901760
  %v933 = vsub.f32 %v19, %v932
  %v934 = vand.u32 %v933, 4294901760
  %v935 = vsub.f32 %v933, %v934
  %v936 = vand.u32 %v935, 4294901760
  %937 = vmatmul.f32.gmra.mxu0 %v936
  %v938 = vpop.f32.mrf.mxu0
  %v939 = vadd.f32 %v830, %v938
  %v940 = vand.u32 %v21, 4294901760
  %v941 = vsub.f32 %v21, %v940
  %v942 = vand.u32 %v941, 4294901760
  %v943 = vsub.f32 %v941, %v942
  %v944 = vand.u32 %v943, 4294901760
  %945 = vmatmul.f32.gmra.mxu0 %v944
  %v946 = vpop.f32.mrf.mxu0
  %v947 = vadd.f32 %v834, %v946
  %v948 = vand.u32 %v23, 4294901760
  %v949 = vsub.f32 %v23, %v948
  %v950 = vand.u32 %v949, 4294901760
  %v951 = vsub.f32 %v949, %v950
  %v952 = vand.u32 %v951, 4294901760
  %953 = vmatmul.f32.gmra.mxu0 %v952
  %v954 = vpop.f32.mrf.mxu0
  %v955 = vadd.f32 %v838, %v954
  %v956 = vand.u32 %v25, 4294901760
  %v957 = vsub.f32 %v25, %v956
  %v958 = vand.u32 %v957, 4294901760
  %v959 = vsub.f32 %v957, %v958
  %v960 = vand.u32 %v959, 4294901760
  %961 = vmatmul.f32.gmra.mxu0 %v960
  %v962 = vpop.f32.mrf.mxu0
  %v963 = vadd.f32 %v842, %v962
  %v964 = vand.u32 %v27, 4294901760
  %v965 = vsub.f32 %v27, %v964
  %v966 = vand.u32 %v965, 4294901760
  %v967 = vsub.f32 %v965, %v966
  %v968 = vand.u32 %v967, 4294901760
  %969 = vmatmul.f32.gmra.mxu0 %v968
  %v970 = vpop.f32.mrf.mxu0
  %v971 = vadd.f32 %v846, %v970
  %v972 = vand.u32 %v29, 4294901760
  %v973 = vsub.f32 %v29, %v972
  %v974 = vand.u32 %v973, 4294901760
  %v975 = vsub.f32 %v973, %v974
  %v976 = vand.u32 %v975, 4294901760
  %977 = vmatmul.f32.gmra.mxu0 %v976
  %v978 = vpop.f32.mrf.mxu0
  %v979 = vadd.f32 %v850, %v978
  %v980 = vand.u32 %v31, 4294901760
  %v981 = vsub.f32 %v31, %v980
  %v982 = vand.u32 %v981, 4294901760
  %v983 = vsub.f32 %v981, %v982
  %v984 = vand.u32 %v983, 4294901760
  %985 = vmatmul.f32.gmra.mxu0 %v984
  %v986 = vpop.f32.mrf.mxu0
  %v987 = vadd.f32 %v854, %v986
  %v988 = vand.u32 %v33, 4294901760
  %v989 = vsub.f32 %v33, %v988
  %v990 = vand.u32 %v989, 4294901760
  %v991 = vsub.f32 %v989, %v990
  %v992 = vand.u32 %v991, 4294901760
  %993 = vmatmul.f32.gmra.mxu0 %v992
  %v994 = vpop.f32.mrf.mxu0
  %v995 = vadd.f32 %v858, %v994
  %v996 = vand.u32 %v35, 4294901760
  %v997 = vsub.f32 %v35, %v996
  %v998 = vand.u32 %v997, 4294901760
  %v999 = vsub.f32 %v997, %v998
  %v1000 = vand.u32 %v999, 4294901760
  %1001 = vmatmul.f32.gmra.mxu0 %v1000
  %v1002 = vpop.f32.mrf.mxu0
  %v1003 = vadd.f32 %v862, %v1002
  %v1004 = vand.u32 %v37, 4294901760
  %v1005 = vsub.f32 %v37, %v1004
  %v1006 = vand.u32 %v1005, 4294901760
  %v1007 = vsub.f32 %v1005, %v1006
  %v1008 = vand.u32 %v1007, 4294901760
  %1009 = vmatmul.f32.gmra.mxu0 %v1008
  %v1010 = vpop.f32.mrf.mxu0
  %v1011 = vadd.f32 %v866, %v1010
  %v1012 = vand.u32 %v39, 4294901760
  %v1013 = vsub.f32 %v39, %v1012
  %v1014 = vand.u32 %v1013, 4294901760
  %v1015 = vsub.f32 %v1013, %v1014
  %v1016 = vand.u32 %v1015, 4294901760
  %1017 = vmatmul.f32.gmra.mxu0 %v1016
  %v1018 = vpop.f32.mrf.mxu0
  %v1019 = vadd.f32 %v870, %v1018
  %v1020 = vand.u32 %v41, 4294901760
  %v1021 = vsub.f32 %v41, %v1020
  %v1022 = vand.u32 %v1021, 4294901760
  %v1023 = vsub.f32 %v1021, %v1022
  %v1024 = vand.u32 %v1023, 4294901760
  %1025 = vmatmul.f32.gmra.mxu0 %v1024
  %v1026 = vpop.f32.mrf.mxu0
  %v1027 = vadd.f32 %v874, %v1026
  %v1028 = vand.u32 %v43, 4294901760
  %v1029 = vsub.f32 %v43, %v1028
  %v1030 = vand.u32 %v1029, 4294901760
  %v1031 = vsub.f32 %v1029, %v1030
  %v1032 = vand.u32 %v1031, 4294901760
  %1033 = vmatmul.f32.gmra.mxu0 %v1032
  %v1034 = vpop.f32.mrf.mxu0
  %v1035 = vadd.f32 %v878, %v1034
  %v1036 = vand.u32 %v45, 4294901760
  %v1037 = vsub.f32 %v45, %v1036
  %v1038 = vand.u32 %v1037, 4294901760
  %v1039 = vsub.f32 %v1037, %v1038
  %v1040 = vand.u32 %v1039, 4294901760
  %1041 = vmatmul.f32.gmra.mxu0 %v1040
  %v1042 = vpop.f32.mrf.mxu0
  %v1043 = vadd.f32 %v882, %v1042
  %1044 = vdwg.mxu0
  %v1045 = vand.u32 %v77, 4294901760
  %v1046 = vsub.f32 %v77, %v1045
  %v1047 = vand.u32 %v1046, 4294901760
  %v1048 = vsub.f32 %v1046, %v1047
  %v1049 = vand.u32 %v1048, 4294901760
  %1050 = vmatpush.msra.mxu0 %v1049
  %v1051 = vand.u32 %v76, 4294901760
  %v1052 = vsub.f32 %v76, %v1051
  %v1053 = vand.u32 %v1052, 4294901760
  %v1054 = vsub.f32 %v1052, %v1053
  %v1055 = vand.u32 %v1054, 4294901760
  %1056 = vmatpush.msra.mxu0 %v1055
  %v1057 = vand.u32 %v75, 4294901760
  %v1058 = vsub.f32 %v75, %v1057
  %v1059 = vand.u32 %v1058, 4294901760
  %v1060 = vsub.f32 %v1058, %v1059
  %v1061 = vand.u32 %v1060, 4294901760
  %1062 = vmatpush.msra.mxu0 %v1061
  %v1063 = vand.u32 %v74, 4294901760
  %v1064 = vsub.f32 %v74, %v1063
  %v1065 = vand.u32 %v1064, 4294901760
  %v1066 = vsub.f32 %v1064, %v1065
  %v1067 = vand.u32 %v1066, 4294901760
  %1068 = vmatpush.msra.mxu0 %v1067
  %v1069 = vand.u32 %v73, 4294901760
  %v1070 = vsub.f32 %v73, %v1069
  %v1071 = vand.u32 %v1070, 4294901760
  %v1072 = vsub.f32 %v1070, %v1071
  %v1073 = vand.u32 %v1072, 4294901760
  %1074 = vmatpush.msra.mxu0 %v1073
  %v1075 = vand.u32 %v72, 4294901760
  %v1076 = vsub.f32 %v72, %v1075
  %v1077 = vand.u32 %v1076, 4294901760
  %v1078 = vsub.f32 %v1076, %v1077
  %v1079 = vand.u32 %v1078, 4294901760
  %1080 = vmatpush.msra.mxu0 %v1079
  %v1081 = vand.u32 %v71, 4294901760
  %v1082 = vsub.f32 %v71, %v1081
  %v1083 = vand.u32 %v1082, 4294901760
  %v1084 = vsub.f32 %v1082, %v1083
  %v1085 = vand.u32 %v1084, 4294901760
  %1086 = vmatpush.msra.mxu0 %v1085
  %v1087 = vand.u32 %v70, 4294901760
  %v1088 = vsub.f32 %v70, %v1087
  %v1089 = vand.u32 %v1088, 4294901760
  %v1090 = vsub.f32 %v1088, %v1089
  %v1091 = vand.u32 %v1090, 4294901760
  %1092 = vmatpush.msra.mxu0 %v1091
  %v1093 = vand.u32 %v69, 4294901760
  %v1094 = vsub.f32 %v69, %v1093
  %v1095 = vand.u32 %v1094, 4294901760
  %v1096 = vsub.f32 %v1094, %v1095
  %v1097 = vand.u32 %v1096, 4294901760
  %1098 = vmatpush.msra.mxu0 %v1097
  %v1099 = vand.u32 %v68, 4294901760
  %v1100 = vsub.f32 %v68, %v1099
  %v1101 = vand.u32 %v1100, 4294901760
  %v1102 = vsub.f32 %v1100, %v1101
  %v1103 = vand.u32 %v1102, 4294901760
  %1104 = vmatpush.msra.mxu0 %v1103
  %v1105 = vand.u32 %v67, 4294901760
  %v1106 = vsub.f32 %v67, %v1105
  %v1107 = vand.u32 %v1106, 4294901760
  %v1108 = vsub.f32 %v1106, %v1107
  %v1109 = vand.u32 %v1108, 4294901760
  %1110 = vmatpush.msra.mxu0 %v1109
  %v1111 = vand.u32 %v66, 4294901760
  %v1112 = vsub.f32 %v66, %v1111
  %v1113 = vand.u32 %v1112, 4294901760
  %v1114 = vsub.f32 %v1112, %v1113
  %v1115 = vand.u32 %v1114, 4294901760
  %1116 = vmatpush.msra.mxu0 %v1115
  %v1117 = vand.u32 %v65, 4294901760
  %v1118 = vsub.f32 %v65, %v1117
  %v1119 = vand.u32 %v1118, 4294901760
  %v1120 = vsub.f32 %v1118, %v1119
  %v1121 = vand.u32 %v1120, 4294901760
  %1122 = vmatpush.msra.mxu0 %v1121
  %v1123 = vand.u32 %v64, 4294901760
  %v1124 = vsub.f32 %v64, %v1123
  %v1125 = vand.u32 %v1124, 4294901760
  %v1126 = vsub.f32 %v1124, %v1125
  %v1127 = vand.u32 %v1126, 4294901760
  %1128 = vmatpush.msra.mxu0 %v1127
  %v1129 = vand.u32 %v63, 4294901760
  %v1130 = vsub.f32 %v63, %v1129
  %v1131 = vand.u32 %v1130, 4294901760
  %v1132 = vsub.f32 %v1130, %v1131
  %v1133 = vand.u32 %v1132, 4294901760
  %1134 = vmatpush.msra.mxu0 %v1133
  %v1135 = vand.u32 %v62, 4294901760
  %v1136 = vsub.f32 %v62, %v1135
  %v1137 = vand.u32 %v1136, 4294901760
  %v1138 = vsub.f32 %v1136, %v1137
  %v1139 = vand.u32 %v1138, 4294901760
  %1140 = vmatpush.msra.mxu0 %v1139
  %v1141 = vand.u32 %v15, 4294901760
  %1142 = vmatmul.f32.gmra.mxu0 %v1141
  %v1143 = vpop.f32.mrf.mxu0
  %v1144 = vadd.f32 %v923, %v1143
  %v1145 = vand.u32 %v17, 4294901760
  %1146 = vmatmul.f32.gmra.mxu0 %v1145
  %v1147 = vpop.f32.mrf.mxu0
  %v1148 = vadd.f32 %v931, %v1147
  %v1149 = vand.u32 %v19, 4294901760
  %1150 = vmatmul.f32.gmra.mxu0 %v1149
  %v1151 = vpop.f32.mrf.mxu0
  %v1152 = vadd.f32 %v939, %v1151
  %v1153 = vand.u32 %v21, 4294901760
  %1154 = vmatmul.f32.gmra.mxu0 %v1153
  %v1155 = vpop.f32.mrf.mxu0
  %v1156 = vadd.f32 %v947, %v1155
  %v1157 = vand.u32 %v23, 4294901760
  %1158 = vmatmul.f32.gmra.mxu0 %v1157
  %v1159 = vpop.f32.mrf.mxu0
  %v1160 = vadd.f32 %v955, %v1159
  %v1161 = vand.u32 %v25, 4294901760
  %1162 = vmatmul.f32.gmra.mxu0 %v1161
  %v1163 = vpop.f32.mrf.mxu0
  %v1164 = vadd.f32 %v963, %v1163
  %v1165 = vand.u32 %v27, 4294901760
  %1166 = vmatmul.f32.gmra.mxu0 %v1165
  %v1167 = vpop.f32.mrf.mxu0
  %v1168 = vadd.f32 %v971, %v1167
  %v1169 = vand.u32 %v29, 4294901760
  %1170 = vmatmul.f32.gmra.mxu0 %v1169
  %v1171 = vpop.f32.mrf.mxu0
  %v1172 = vadd.f32 %v979, %v1171
  %v1173 = vand.u32 %v31, 4294901760
  %1174 = vmatmul.f32.gmra.mxu0 %v1173
  %v1175 = vpop.f32.mrf.mxu0
  %v1176 = vadd.f32 %v987, %v1175
  %v1177 = vand.u32 %v33, 4294901760
  %1178 = vmatmul.f32.gmra.mxu0 %v1177
  %v1179 = vpop.f32.mrf.mxu0
  %v1180 = vadd.f32 %v995, %v1179
  %v1181 = vand.u32 %v35, 4294901760
  %1182 = vmatmul.f32.gmra.mxu0 %v1181
  %v1183 = vpop.f32.mrf.mxu0
  %v1184 = vadd.f32 %v1003, %v1183
  %v1185 = vand.u32 %v37, 4294901760
  %1186 = vmatmul.f32.gmra.mxu0 %v1185
  %v1187 = vpop.f32.mrf.mxu0
  %v1188 = vadd.f32 %v1011, %v1187
  %v1189 = vand.u32 %v39, 4294901760
  %1190 = vmatmul.f32.gmra.mxu0 %v1189
  %v1191 = vpop.f32.mrf.mxu0
  %v1192 = vadd.f32 %v1019, %v1191
  %v1193 = vand.u32 %v41, 4294901760
  %1194 = vmatmul.f32.gmra.mxu0 %v1193
  %v1195 = vpop.f32.mrf.mxu0
  %v1196 = vadd.f32 %v1027, %v1195
  %v1197 = vand.u32 %v43, 4294901760
  %1198 = vmatmul.f32.gmra.mxu0 %v1197
  %v1199 = vpop.f32.mrf.mxu0
  %v1200 = vadd.f32 %v1035, %v1199
  %v1201 = vand.u32 %v45, 4294901760
  %1202 = vmatmul.f32.gmra.mxu0 %v1201
  %v1203 = vpop.f32.mrf.mxu0
  %v1204 = vadd.f32 %v1043, %v1203
  %1205 = vdwg.mxu0
  %v1206 = vand.u32 %v77, 4294901760
  %v1207 = vsub.f32 %v77, %v1206
  %1208 = vmatpush.msra.mxu0 %v1207
  %v1209 = vand.u32 %v76, 4294901760
  %v1210 = vsub.f32 %v76, %v1209
  %1211 = vmatpush.msra.mxu0 %v1210
  %v1212 = vand.u32 %v75, 4294901760
  %v1213 = vsub.f32 %v75, %v1212
  %1214 = vmatpush.msra.mxu0 %v1213
  %v1215 = vand.u32 %v74, 4294901760
  %v1216 = vsub.f32 %v74, %v1215
  %1217 = vmatpush.msra.mxu0 %v1216
  %v1218 = vand.u32 %v73, 4294901760
  %v1219 = vsub.f32 %v73, %v1218
  %1220 = vmatpush.msra.mxu0 %v1219
  %v1221 = vand.u32 %v72, 4294901760
  %v1222 = vsub.f32 %v72, %v1221
  %1223 = vmatpush.msra.mxu0 %v1222
  %v1224 = vand.u32 %v71, 4294901760
  %v1225 = vsub.f32 %v71, %v1224
  %1226 = vmatpush.msra.mxu0 %v1225
  %v1227 = vand.u32 %v70, 4294901760
  %v1228 = vsub.f32 %v70, %v1227
  %1229 = vmatpush.msra.mxu0 %v1228
  %v1230 = vand.u32 %v69, 4294901760
  %v1231 = vsub.f32 %v69, %v1230
  %1232 = vmatpush.msra.mxu0 %v1231
  %v1233 = vand.u32 %v68, 4294901760
  %v1234 = vsub.f32 %v68, %v1233
  %1235 = vmatpush.msra.mxu0 %v1234
  %v1236 = vand.u32 %v67, 4294901760
  %v1237 = vsub.f32 %v67, %v1236
  %1238 = vmatpush.msra.mxu0 %v1237
  %v1239 = vand.u32 %v66, 4294901760
  %v1240 = vsub.f32 %v66, %v1239
  %1241 = vmatpush.msra.mxu0 %v1240
  %v1242 = vand.u32 %v65, 4294901760
  %v1243 = vsub.f32 %v65, %v1242
  %1244 = vmatpush.msra.mxu0 %v1243
  %v1245 = vand.u32 %v64, 4294901760
  %v1246 = vsub.f32 %v64, %v1245
  %1247 = vmatpush.msra.mxu0 %v1246
  %v1248 = vand.u32 %v63, 4294901760
  %v1249 = vsub.f32 %v63, %v1248
  %1250 = vmatpush.msra.mxu0 %v1249
  %v1251 = vand.u32 %v62, 4294901760
  %v1252 = vsub.f32 %v62, %v1251
  %1253 = vmatpush.msra.mxu0 %v1252
  %v1254 = vand.u32 %v15, 4294901760
  %v1255 = vsub.f32 %v15, %v1254
  %1256 = vmatmul.f32.gmra.mxu0 %v1255
  %v1257 = vpop.f32.mrf.mxu0
  %v1258 = vadd.f32 %v1144, %v1257
  %v1259 = vand.u32 %v17, 4294901760
  %v1260 = vsub.f32 %v17, %v1259
  %1261 = vmatmul.f32.gmra.mxu0 %v1260
  %v1262 = vpop.f32.mrf.mxu0
  %v1263 = vadd.f32 %v1148, %v1262
  %v1264 = vand.u32 %v19, 4294901760
  %v1265 = vsub.f32 %v19, %v1264
  %1266 = vmatmul.f32.gmra.mxu0 %v1265
  %v1267 = vpop.f32.mrf.mxu0
  %v1268 = vadd.f32 %v1152, %v1267
  %v1269 = vand.u32 %v21, 4294901760
  %v1270 = vsub.f32 %v21, %v1269
  %1271 = vmatmul.f32.gmra.mxu0 %v1270
  %v1272 = vpop.f32.mrf.mxu0
  %v1273 = vadd.f32 %v1156, %v1272
  %v1274 = vand.u32 %v23, 4294901760
  %v1275 = vsub.f32 %v23, %v1274
  %1276 = vmatmul.f32.gmra.mxu0 %v1275
  %v1277 = vpop.f32.mrf.mxu0
  %v1278 = vadd.f32 %v1160, %v1277
  %v1279 = vand.u32 %v25, 4294901760
  %v1280 = vsub.f32 %v25, %v1279
  %1281 = vmatmul.f32.gmra.mxu0 %v1280
  %v1282 = vpop.f32.mrf.mxu0
  %v1283 = vadd.f32 %v1164, %v1282
  %v1284 = vand.u32 %v27, 4294901760
  %v1285 = vsub.f32 %v27, %v1284
  %1286 = vmatmul.f32.gmra.mxu0 %v1285
  %v1287 = vpop.f32.mrf.mxu0
  %v1288 = vadd.f32 %v1168, %v1287
  %v1289 = vand.u32 %v29, 4294901760
  %v1290 = vsub.f32 %v29, %v1289
  %1291 = vmatmul.f32.gmra.mxu0 %v1290
  %v1292 = vpop.f32.mrf.mxu0
  %v1293 = vadd.f32 %v1172, %v1292
  %v1294 = vand.u32 %v31, 4294901760
  %v1295 = vsub.f32 %v31, %v1294
  %1296 = vmatmul.f32.gmra.mxu0 %v1295
  %v1297 = vpop.f32.mrf.mxu0
  %v1298 = vadd.f32 %v1176, %v1297
  %v1299 = vand.u32 %v33, 4294901760
  %v1300 = vsub.f32 %v33, %v1299
  %1301 = vmatmul.f32.gmra.mxu0 %v1300
  %v1302 = vpop.f32.mrf.mxu0
  %v1303 = vadd.f32 %v1180, %v1302
  %v1304 = vand.u32 %v35, 4294901760
  %v1305 = vsub.f32 %v35, %v1304
  %1306 = vmatmul.f32.gmra.mxu0 %v1305
  %v1307 = vpop.f32.mrf.mxu0
  %v1308 = vadd.f32 %v1184, %v1307
  %v1309 = vand.u32 %v37, 4294901760
  %v1310 = vsub.f32 %v37, %v1309
  %1311 = vmatmul.f32.gmra.mxu0 %v1310
  %v1312 = vpop.f32.mrf.mxu0
  %v1313 = vadd.f32 %v1188, %v1312
  %v1314 = vand.u32 %v39, 4294901760
  %v1315 = vsub.f32 %v39, %v1314
  %1316 = vmatmul.f32.gmra.mxu0 %v1315
  %v1317 = vpop.f32.mrf.mxu0
  %v1318 = vadd.f32 %v1192, %v1317
  %v1319 = vand.u32 %v41, 4294901760
  %v1320 = vsub.f32 %v41, %v1319
  %1321 = vmatmul.f32.gmra.mxu0 %v1320
  %v1322 = vpop.f32.mrf.mxu0
  %v1323 = vadd.f32 %v1196, %v1322
  %v1324 = vand.u32 %v43, 4294901760
  %v1325 = vsub.f32 %v43, %v1324
  %1326 = vmatmul.f32.gmra.mxu0 %v1325
  %v1327 = vpop.f32.mrf.mxu0
  %v1328 = vadd.f32 %v1200, %v1327
  %v1329 = vand.u32 %v45, 4294901760
  %v1330 = vsub.f32 %v45, %v1329
  %1331 = vmatmul.f32.gmra.mxu0 %v1330
  %v1332 = vpop.f32.mrf.mxu0
  %v1333 = vadd.f32 %v1204, %v1332
  %1334 = vdwg.mxu0
  %v1335 = vand.u32 %v77, 4294901760
  %1336 = vmatpush.msra.mxu0 %v1335
  %v1337 = vand.u32 %v76, 4294901760
  %1338 = vmatpush.msra.mxu0 %v1337
  %v1339 = vand.u32 %v75, 4294901760
  %1340 = vmatpush.msra.mxu0 %v1339
  %v1341 = vand.u32 %v74, 4294901760
  %1342 = vmatpush.msra.mxu0 %v1341
  %v1343 = vand.u32 %v73, 4294901760
  %1344 = vmatpush.msra.mxu0 %v1343
  %v1345 = vand.u32 %v72, 4294901760
  %1346 = vmatpush.msra.mxu0 %v1345
  %v1347 = vand.u32 %v71, 4294901760
  %1348 = vmatpush.msra.mxu0 %v1347
  %v1349 = vand.u32 %v70, 4294901760
  %1350 = vmatpush.msra.mxu0 %v1349
  %v1351 = vand.u32 %v69, 4294901760
  %1352 = vmatpush.msra.mxu0 %v1351
  %v1353 = vand.u32 %v68, 4294901760
  %1354 = vmatpush.msra.mxu0 %v1353
  %v1355 = vand.u32 %v67, 4294901760
  %1356 = vmatpush.msra.mxu0 %v1355
  %v1357 = vand.u32 %v66, 4294901760
  %1358 = vmatpush.msra.mxu0 %v1357
  %v1359 = vand.u32 %v65, 4294901760
  %1360 = vmatpush.msra.mxu0 %v1359
  %v1361 = vand.u32 %v64, 4294901760
  %1362 = vmatpush.msra.mxu0 %v1361
  %v1363 = vand.u32 %v63, 4294901760
  %1364 = vmatpush.msra.mxu0 %v1363
  %v1365 = vand.u32 %v62, 4294901760
  %1366 = vmatpush.msra.mxu0 %v1365
  %v1367 = vand.u32 %v15, 4294901760
  %v1368 = vsub.f32 %v15, %v1367
  %v1369 = vand.u32 %v1368, 4294901760
  %1370 = vmatmul.f32.gmra.mxu0 %v1369
  %v1371 = vpop.f32.mrf.mxu0
  %v1372 = vadd.f32 %v1258, %v1371
  %v1373 = vand.u32 %v17, 4294901760
  %v1374 = vsub.f32 %v17, %v1373
  %v1375 = vand.u32 %v1374, 4294901760
  %1376 = vmatmul.f32.gmra.mxu0 %v1375
  %v1377 = vpop.f32.mrf.mxu0
  %v1378 = vadd.f32 %v1263, %v1377
  %v1379 = vand.u32 %v19, 4294901760
  %v1380 = vsub.f32 %v19, %v1379
  %v1381 = vand.u32 %v1380, 4294901760
  %1382 = vmatmul.f32.gmra.mxu0 %v1381
  %v1383 = vpop.f32.mrf.mxu0
  %v1384 = vadd.f32 %v1268, %v1383
  %v1385 = vand.u32 %v21, 4294901760
  %v1386 = vsub.f32 %v21, %v1385
  %v1387 = vand.u32 %v1386, 4294901760
  %1388 = vmatmul.f32.gmra.mxu0 %v1387
  %v1389 = vpop.f32.mrf.mxu0
  %v1390 = vadd.f32 %v1273, %v1389
  %v1391 = vand.u32 %v23, 4294901760
  %v1392 = vsub.f32 %v23, %v1391
  %v1393 = vand.u32 %v1392, 4294901760
  %1394 = vmatmul.f32.gmra.mxu0 %v1393
  %v1395 = vpop.f32.mrf.mxu0
  %v1396 = vadd.f32 %v1278, %v1395
  %v1397 = vand.u32 %v25, 4294901760
  %v1398 = vsub.f32 %v25, %v1397
  %v1399 = vand.u32 %v1398, 4294901760
  %1400 = vmatmul.f32.gmra.mxu0 %v1399
  %v1401 = vpop.f32.mrf.mxu0
  %v1402 = vadd.f32 %v1283, %v1401
  %v1403 = vand.u32 %v27, 4294901760
  %v1404 = vsub.f32 %v27, %v1403
  %v1405 = vand.u32 %v1404, 4294901760
  %1406 = vmatmul.f32.gmra.mxu0 %v1405
  %v1407 = vpop.f32.mrf.mxu0
  %v1408 = vadd.f32 %v1288, %v1407
  %v1409 = vand.u32 %v29, 4294901760
  %v1410 = vsub.f32 %v29, %v1409
  %v1411 = vand.u32 %v1410, 4294901760
  %1412 = vmatmul.f32.gmra.mxu0 %v1411
  %v1413 = vpop.f32.mrf.mxu0
  %v1414 = vadd.f32 %v1293, %v1413
  %v1415 = vand.u32 %v31, 4294901760
  %v1416 = vsub.f32 %v31, %v1415
  %v1417 = vand.u32 %v1416, 4294901760
  %1418 = vmatmul.f32.gmra.mxu0 %v1417
  %v1419 = vpop.f32.mrf.mxu0
  %v1420 = vadd.f32 %v1298, %v1419
  %v1421 = vand.u32 %v33, 4294901760
  %v1422 = vsub.f32 %v33, %v1421
  %v1423 = vand.u32 %v1422, 4294901760
  %1424 = vmatmul.f32.gmra.mxu0 %v1423
  %v1425 = vpop.f32.mrf.mxu0
  %v1426 = vadd.f32 %v1303, %v1425
  %v1427 = vand.u32 %v35, 4294901760
  %v1428 = vsub.f32 %v35, %v1427
  %v1429 = vand.u32 %v1428, 4294901760
  %1430 = vmatmul.f32.gmra.mxu0 %v1429
  %v1431 = vpop.f32.mrf.mxu0
  %v1432 = vadd.f32 %v1308, %v1431
  %v1433 = vand.u32 %v37, 4294901760
  %v1434 = vsub.f32 %v37, %v1433
  %v1435 = vand.u32 %v1434, 4294901760
  %1436 = vmatmul.f32.gmra.mxu0 %v1435
  %v1437 = vpop.f32.mrf.mxu0
  %v1438 = vadd.f32 %v1313, %v1437
  %v1439 = vand.u32 %v39, 4294901760
  %v1440 = vsub.f32 %v39, %v1439
  %v1441 = vand.u32 %v1440, 4294901760
  %1442 = vmatmul.f32.gmra.mxu0 %v1441
  %v1443 = vpop.f32.mrf.mxu0
  %v1444 = vadd.f32 %v1318, %v1443
  %v1445 = vand.u32 %v41, 4294901760
  %v1446 = vsub.f32 %v41, %v1445
  %v1447 = vand.u32 %v1446, 4294901760
  %1448 = vmatmul.f32.gmra.mxu0 %v1447
  %v1449 = vpop.f32.mrf.mxu0
  %v1450 = vadd.f32 %v1323, %v1449
  %v1451 = vand.u32 %v43, 4294901760
  %v1452 = vsub.f32 %v43, %v1451
  %v1453 = vand.u32 %v1452, 4294901760
  %1454 = vmatmul.f32.gmra.mxu0 %v1453
  %v1455 = vpop.f32.mrf.mxu0
  %v1456 = vadd.f32 %v1328, %v1455
  %v1457 = vand.u32 %v45, 4294901760
  %v1458 = vsub.f32 %v45, %v1457
  %v1459 = vand.u32 %v1458, 4294901760
  %1460 = vmatmul.f32.gmra.mxu0 %v1459
  %v1461 = vpop.f32.mrf.mxu0
  %v1462 = vadd.f32 %v1333, %v1461
  %1463 = vdwg.mxu0
  %v1464 = vand.u32 %v77, 4294901760
  %v1465 = vsub.f32 %v77, %v1464
  %v1466 = vand.u32 %v1465, 4294901760
  %1467 = vmatpush.msra.mxu0 %v1466
  %v1468 = vand.u32 %v76, 4294901760
  %v1469 = vsub.f32 %v76, %v1468
  %v1470 = vand.u32 %v1469, 4294901760
  %1471 = vmatpush.msra.mxu0 %v1470
  %v1472 = vand.u32 %v75, 4294901760
  %v1473 = vsub.f32 %v75, %v1472
  %v1474 = vand.u32 %v1473, 4294901760
  %1475 = vmatpush.msra.mxu0 %v1474
  %v1476 = vand.u32 %v74, 4294901760
  %v1477 = vsub.f32 %v74, %v1476
  %v1478 = vand.u32 %v1477, 4294901760
  %1479 = vmatpush.msra.mxu0 %v1478
  %v1480 = vand.u32 %v73, 4294901760
  %v1481 = vsub.f32 %v73, %v1480
  %v1482 = vand.u32 %v1481, 4294901760
  %1483 = vmatpush.msra.mxu0 %v1482
  %v1484 = vand.u32 %v72, 4294901760
  %v1485 = vsub.f32 %v72, %v1484
  %v1486 = vand.u32 %v1485, 4294901760
  %1487 = vmatpush.msra.mxu0 %v1486
  %v1488 = vand.u32 %v71, 4294901760
  %v1489 = vsub.f32 %v71, %v1488
  %v1490 = vand.u32 %v1489, 4294901760
  %1491 = vmatpush.msra.mxu0 %v1490
  %v1492 = vand.u32 %v70, 4294901760
  %v1493 = vsub.f32 %v70, %v1492
  %v1494 = vand.u32 %v1493, 4294901760
  %1495 = vmatpush.msra.mxu0 %v1494
  %v1496 = vand.u32 %v69, 4294901760
  %v1497 = vsub.f32 %v69, %v1496
  %v1498 = vand.u32 %v1497, 4294901760
  %1499 = vmatpush.msra.mxu0 %v1498
  %v1500 = vand.u32 %v68, 4294901760
  %v1501 = vsub.f32 %v68, %v1500
  %v1502 = vand.u32 %v1501, 4294901760
  %1503 = vmatpush.msra.mxu0 %v1502
  %v1504 = vand.u32 %v67, 4294901760
  %v1505 = vsub.f32 %v67, %v1504
  %v1506 = vand.u32 %v1505, 4294901760
  %1507 = vmatpush.msra.mxu0 %v1506
  %v1508 = vand.u32 %v66, 4294901760
  %v1509 = vsub.f32 %v66, %v1508
  %v1510 = vand.u32 %v1509, 4294901760
  %1511 = vmatpush.msra.mxu0 %v1510
  %v1512 = vand.u32 %v65, 4294901760
  %v1513 = vsub.f32 %v65, %v1512
  %v1514 = vand.u32 %v1513, 4294901760
  %1515 = vmatpush.msra.mxu0 %v1514
  %v1516 = vand.u32 %v64, 4294901760
  %v1517 = vsub.f32 %v64, %v1516
  %v1518 = vand.u32 %v1517, 4294901760
  %1519 = vmatpush.msra.mxu0 %v1518
  %v1520 = vand.u32 %v63, 4294901760
  %v1521 = vsub.f32 %v63, %v1520
  %v1522 = vand.u32 %v1521, 4294901760
  %1523 = vmatpush.msra.mxu0 %v1522
  %v1524 = vand.u32 %v62, 4294901760
  %v1525 = vsub.f32 %v62, %v1524
  %v1526 = vand.u32 %v1525, 4294901760
  %1527 = vmatpush.msra.mxu0 %v1526
  %v1528 = vand.u32 %v15, 4294901760
  %1529 = vmatmul.f32.gmra.mxu0 %v1528
  %v1530 = vpop.f32.mrf.mxu0
  %v1531 = vadd.f32 %v1372, %v1530
  %v1532 = vand.u32 %v17, 4294901760
  %1533 = vmatmul.f32.gmra.mxu0 %v1532
  %v1534 = vpop.f32.mrf.mxu0
  %v1535 = vadd.f32 %v1378, %v1534
  %v1536 = vand.u32 %v19, 4294901760
  %1537 = vmatmul.f32.gmra.mxu0 %v1536
  %v1538 = vpop.f32.mrf.mxu0
  %v1539 = vadd.f32 %v1384, %v1538
  %v1540 = vand.u32 %v21, 4294901760
  %1541 = vmatmul.f32.gmra.mxu0 %v1540
  %v1542 = vpop.f32.mrf.mxu0
  %v1543 = vadd.f32 %v1390, %v1542
  %v1544 = vand.u32 %v23, 4294901760
  %1545 = vmatmul.f32.gmra.mxu0 %v1544
  %v1546 = vpop.f32.mrf.mxu0
  %v1547 = vadd.f32 %v1396, %v1546
  %v1548 = vand.u32 %v25, 4294901760
  %1549 = vmatmul.f32.gmra.mxu0 %v1548
  %v1550 = vpop.f32.mrf.mxu0
  %v1551 = vadd.f32 %v1402, %v1550
  %v1552 = vand.u32 %v27, 4294901760
  %1553 = vmatmul.f32.gmra.mxu0 %v1552
  %v1554 = vpop.f32.mrf.mxu0
  %v1555 = vadd.f32 %v1408, %v1554
  %v1556 = vand.u32 %v29, 4294901760
  %1557 = vmatmul.f32.gmra.mxu0 %v1556
  %v1558 = vpop.f32.mrf.mxu0
  %v1559 = vadd.f32 %v1414, %v1558
  %v1560 = vand.u32 %v31, 4294901760
  %1561 = vmatmul.f32.gmra.mxu0 %v1560
  %v1562 = vpop.f32.mrf.mxu0
  %v1563 = vadd.f32 %v1420, %v1562
  %v1564 = vand.u32 %v33, 4294901760
  %1565 = vmatmul.f32.gmra.mxu0 %v1564
  %v1566 = vpop.f32.mrf.mxu0
  %v1567 = vadd.f32 %v1426, %v1566
  %v1568 = vand.u32 %v35, 4294901760
  %1569 = vmatmul.f32.gmra.mxu0 %v1568
  %v1570 = vpop.f32.mrf.mxu0
  %v1571 = vadd.f32 %v1432, %v1570
  %v1572 = vand.u32 %v37, 4294901760
  %1573 = vmatmul.f32.gmra.mxu0 %v1572
  %v1574 = vpop.f32.mrf.mxu0
  %v1575 = vadd.f32 %v1438, %v1574
  %v1576 = vand.u32 %v39, 4294901760
  %1577 = vmatmul.f32.gmra.mxu0 %v1576
  %v1578 = vpop.f32.mrf.mxu0
  %v1579 = vadd.f32 %v1444, %v1578
  %v1580 = vand.u32 %v41, 4294901760
  %1581 = vmatmul.f32.gmra.mxu0 %v1580
  %v1582 = vpop.f32.mrf.mxu0
  %v1583 = vadd.f32 %v1450, %v1582
  %v1584 = vand.u32 %v43, 4294901760
  %1585 = vmatmul.f32.gmra.mxu0 %v1584
  %v1586 = vpop.f32.mrf.mxu0
  %v1587 = vadd.f32 %v1456, %v1586
  %v1588 = vand.u32 %v45, 4294901760
  %1589 = vmatmul.f32.gmra.mxu0 %v1588
  %v1590 = vpop.f32.mrf.mxu0
  %v1591 = vadd.f32 %v1462, %v1590
  %1592 = vdwg.mxu0
  %v1593 = vand.u32 %v77, 4294901760
  %1594 = vmatpush.msra.mxu0 %v1593
  %v1595 = vand.u32 %v76, 4294901760
  %1596 = vmatpush.msra.mxu0 %v1595
  %v1597 = vand.u32 %v75, 4294901760
  %1598 = vmatpush.msra.mxu0 %v1597
  %v1599 = vand.u32 %v74, 4294901760
  %1600 = vmatpush.msra.mxu0 %v1599
  %v1601 = vand.u32 %v73, 4294901760
  %1602 = vmatpush.msra.mxu0 %v1601
  %v1603 = vand.u32 %v72, 4294901760
  %1604 = vmatpush.msra.mxu0 %v1603
  %v1605 = vand.u32 %v71, 4294901760
  %1606 = vmatpush.msra.mxu0 %v1605
  %v1607 = vand.u32 %v70, 4294901760
  %1608 = vmatpush.msra.mxu0 %v1607
  %v1609 = vand.u32 %v69, 4294901760
  %1610 = vmatpush.msra.mxu0 %v1609
  %v1611 = vand.u32 %v68, 4294901760
  %1612 = vmatpush.msra.mxu0 %v1611
  %v1613 = vand.u32 %v67, 4294901760
  %1614 = vmatpush.msra.mxu0 %v1613
  %v1615 = vand.u32 %v66, 4294901760
  %1616 = vmatpush.msra.mxu0 %v1615
  %v1617 = vand.u32 %v65, 4294901760
  %1618 = vmatpush.msra.mxu0 %v1617
  %v1619 = vand.u32 %v64, 4294901760
  %1620 = vmatpush.msra.mxu0 %v1619
  %v1621 = vand.u32 %v63, 4294901760
  %1622 = vmatpush.msra.mxu0 %v1621
  %v1623 = vand.u32 %v62, 4294901760
  %1624 = vmatpush.msra.mxu0 %v1623
  %v1625 = vand.u32 %v15, 4294901760
  %1626 = vmatmul.f32.gmra.mxu0 %v1625
  %v1627 = vpop.f32.mrf.mxu0
  %v1628 = vadd.f32 %v1531, %v1627
  %v1629 = vand.u32 %v17, 4294901760
  %1630 = vmatmul.f32.gmra.mxu0 %v1629
  %v1631 = vpop.f32.mrf.mxu0
  %v1632 = vadd.f32 %v1535, %v1631
  %v1633 = vand.u32 %v19, 4294901760
  %1634 = vmatmul.f32.gmra.mxu0 %v1633
  %v1635 = vpop.f32.mrf.mxu0
  %v1636 = vadd.f32 %v1539, %v1635
  %v1637 = vand.u32 %v21, 4294901760
  %1638 = vmatmul.f32.gmra.mxu0 %v1637
  %v1639 = vpop.f32.mrf.mxu0
  %v1640 = vadd.f32 %v1543, %v1639
  %v1641 = vand.u32 %v23, 4294901760
  %1642 = vmatmul.f32.gmra.mxu0 %v1641
  %v1643 = vpop.f32.mrf.mxu0
  %v1644 = vadd.f32 %v1547, %v1643
  %v1645 = vand.u32 %v25, 4294901760
  %1646 = vmatmul.f32.gmra.mxu0 %v1645
  %v1647 = vpop.f32.mrf.mxu0
  %v1648 = vadd.f32 %v1551, %v1647
  %v1649 = vand.u32 %v27, 4294901760
  %1650 = vmatmul.f32.gmra.mxu0 %v1649
  %v1651 = vpop.f32.mrf.mxu0
  %v1652 = vadd.f32 %v1555, %v1651
  %v1653 = vand.u32 %v29, 4294901760
  %1654 = vmatmul.f32.gmra.mxu0 %v1653
  %v1655 = vpop.f32.mrf.mxu0
  %v1656 = vadd.f32 %v1559, %v1655
  %v1657 = vand.u32 %v31, 4294901760
  %1658 = vmatmul.f32.gmra.mxu0 %v1657
  %v1659 = vpop.f32.mrf.mxu0
  %v1660 = vadd.f32 %v1563, %v1659
  %v1661 = vand.u32 %v33, 4294901760
  %1662 = vmatmul.f32.gmra.mxu0 %v1661
  %v1663 = vpop.f32.mrf.mxu0
  %v1664 = vadd.f32 %v1567, %v1663
  %v1665 = vand.u32 %v35, 4294901760
  %1666 = vmatmul.f32.gmra.mxu0 %v1665
  %v1667 = vpop.f32.mrf.mxu0
  %v1668 = vadd.f32 %v1571, %v1667
  %v1669 = vand.u32 %v37, 4294901760
  %1670 = vmatmul.f32.gmra.mxu0 %v1669
  %v1671 = vpop.f32.mrf.mxu0
  %v1672 = vadd.f32 %v1575, %v1671
  %v1673 = vand.u32 %v39, 4294901760
  %1674 = vmatmul.f32.gmra.mxu0 %v1673
  %v1675 = vpop.f32.mrf.mxu0
  %v1676 = vadd.f32 %v1579, %v1675
  %v1677 = vand.u32 %v41, 4294901760
  %1678 = vmatmul.f32.gmra.mxu0 %v1677
  %v1679 = vpop.f32.mrf.mxu0
  %v1680 = vadd.f32 %v1583, %v1679
  %v1681 = vand.u32 %v43, 4294901760
  %1682 = vmatmul.f32.gmra.mxu0 %v1681
  %v1683 = vpop.f32.mrf.mxu0
  %v1684 = vadd.f32 %v1587, %v1683
  %v1685 = vand.u32 %v45, 4294901760
  %1686 = vmatmul.f32.gmra.mxu0 %v1685
  %v1687 = vpop.f32.mrf.mxu0
  %v1688 = vadd.f32 %v1591, %v1687
  %1689 = vdwg.mxu0
  %v1690 = vld [vmem:[%s1] sm:$0x1]
  %v1692 = vperm.slane %v1690, 0
  %v1694 = vmul.f32 %v1628, %v1692
  %v1695 = vmul.f32 %v1632, %v1692
  %v1696 = vmul.f32 %v1636, %v1692
  %v1697 = vmul.f32 %v1640, %v1692
  %v1698 = vmul.f32 %v1644, %v1692
  %v1699 = vmul.f32 %v1648, %v1692
  %v1700 = vmul.f32 %v1652, %v1692
  %v1701 = vmul.f32 %v1656, %v1692
  %v1702 = vmul.f32 %v1660, %v1692
  %v1703 = vmul.f32 %v1664, %v1692
  %v1704 = vmul.f32 %v1668, %v1692
  %v1705 = vmul.f32 %v1672, %v1692
  %v1706 = vmul.f32 %v1676, %v1692
  %v1707 = vmul.f32 %v1680, %v1692
  %v1708 = vmul.f32 %v1684, %v1692
  %v1709 = vmul.f32 %v1688, %v1692
  %vm1710 = vcmask 130048
  %1711 = vst.msk [vmem:[%s3] sm:$0xff] %vm1710, %v1694
  %1712 = vst.msk [vmem:[%s3 + $0x8] sm:$0xff] %vm1710, %v1695
  %1713 = vst.msk [vmem:[%s3 + $0x10] sm:$0xff] %vm1710, %v1696
  %1714 = vst.msk [vmem:[%s3 + $0x18] sm:$0xff] %vm1710, %v1697
  %1715 = vst.msk [vmem:[%s3 + $0x20] sm:$0xff] %vm1710, %v1698
  %1716 = vst.msk [vmem:[%s3 + $0x28] sm:$0xff] %vm1710, %v1699
  %1717 = vst.msk [vmem:[%s3 + $0x30] sm:$0xff] %vm1710, %v1700
  %1718 = vst.msk [vmem:[%s3 + $0x38] sm:$0xff] %vm1710, %v1701
  %1719 = vst.msk [vmem:[%s3 + $0x40] sm:$0xff] %vm1710, %v1702
  %1720 = vst.msk [vmem:[%s3 + $0x48] sm:$0xff] %vm1710, %v1703
  %1721 = vst.msk [vmem:[%s3 + $0x50] sm:$0xff] %vm1710, %v1704
  %1722 = vst.msk [vmem:[%s3 + $0x58] sm:$0xff] %vm1710, %v1705
  %1723 = vst.msk [vmem:[%s3 + $0x60] sm:$0xff] %vm1710, %v1706
  %1724 = vst.msk [vmem:[%s3 + $0x68] sm:$0xff] %vm1710, %v1707
  %1725 = vst.msk [vmem:[%s3 + $0x70] sm:$0xff] %vm1710, %v1708
  %1726 = vst.msk [vmem:[%s3 + $0x78] sm:$0xff] %vm1710, %v1709
  // Predicated region
  $region14: #{tpu_custom_call.1} parent=0 // pred_check
    _
  $region15: #{tpu_custom_call.1} parent=0 // pred_check_branch
    %1728 = sbr.rel (0) target = $region17
  $region16: #{tpu_custom_call.1} parent=0 // pred_region
    _
  $region17: #{tpu_custom_call.1} parent=0 // pred_fallthru
    _
  // Predicated region
  $region18: #{tpu_custom_call.1} parent=0 // pred_check
    _
  $region19: #{tpu_custom_call.1} parent=0 // pred_check_branch
    %1730 = sbr.rel (0) target = $region21
  $region20: #{tpu_custom_call.1} parent=0 // pred_region
    _
  $region21: #{tpu_custom_call.1} parent=0 // pred_fallthru
    _

</llo_original>
